<compile_context>
chip_gen: v5e
topology: v5e:2x2
jax: 0.10.0
libtpu: 0.0.40
codegen_flags: <defaults>
</compile_context>

<pallas_src>
import functools

import jax
import jax.numpy as jnp
from jax.experimental import pallas as pl
from jax.experimental.pallas import tpu as pltpu

HIDDEN = 50     # real LSTM hidden size (PyTorch: hidden_size=50)
H_PAD  = 128    # padded hidden so gate-block boundaries are 128-lane aligned
IN_F   = 2      # LSTM input size
GC1    = 16     # GCNConv(50, 16)
GC2    = 1      # GCNConv(16, 1)
LANE   = 128    # lane-dense padding for the GCN tail / output slab


def lstm_gcn_kernel(x_ref, wih_t_ref, whh_t_ref, bias_ref,
                    adj_ref, w1_ref, b1_ref, w2_ref, b2_ref, out_ref,
                    *, seq_len, num_nodes):
    T, N, Hp = seq_len, num_nodes, H_PAD

    # ---- LSTM input projection (VPU) ----------------------------------------
    # K=2 contraction done as two broadcast multiply-adds instead of an MXU pass
    # (a K=2 matmul pads to the full systolic array for ~1.6% utilization).
    # Kept f32: v5e's VPU has no bf16, and this is off the critical path anyway.
    x = x_ref[...]                         # (T*N, IN_F) f32
    wih_t = wih_t_ref[...]                 # (IN_F, 4*Hp) f32
    gx = (x[:, 0:1] * wih_t[0:1, :]
          + x[:, 1:2] * wih_t[1:2, :]
          + bias_ref[...])                 # (T*N, 4*Hp) f32, bias folded once

    whh_t = whh_t_ref[...]                 # (Hp, 4*Hp) bf16 (pre-cast in wrapper)

    h = jnp.zeros((N, Hp), jnp.float32)
    c = jnp.zeros((N, Hp), jnp.float32)

    # T is small & static: fully unrolled recurrence so the scheduler can
    # overlap gate slicing / EUP pushes with the recurrent matmul.  bf16
    # operands at the dot (f32 accumulate) cut the vmatmul push count ~3x on
    # the serial h->h chain, which is where essentially all latency lives.
    # TODO(synk): stage whh_t once in MXU weight regs (pltpu.matmul_push_rhs +
    # matmul_acc_lhs/matmul_pop) to avoid re-pushing the same RHS every step,
    # and on v7x accumulate the gx slice directly in the MRB.
    for t in range(T):
        gxt = gx[t * N:(t + 1) * N, :]
        if t == 0:
            gates = gxt                    # h0 == 0 -> recurrent term exactly 0
        else:
            gates = gxt + jnp.dot(h.astype(jnp.bfloat16), whh_t,
                                  preferred_element_type=jnp.float32)
        # Gate blocks are laid out [i | f | o | g]; every slice boundary is a
        # multiple of 128 lanes -> unmasked slices, one sigmoid for 3 gates.
        sig = jax.nn.sigmoid(gates[:, :3 * Hp])
        g   = jnp.tanh(gates[:, 3 * Hp:])
        i_g = sig[:, 0 * Hp:1 * Hp]
        f_g = sig[:, 1 * Hp:2 * Hp]
        o_g = sig[:, 2 * Hp:3 * Hp]
        c = f_g * c + i_g * g
        h = o_g * jnp.tanh(c)
    # h == h_n.squeeze(0); padded hidden columns stay exactly zero.

    adj = adj_ref[...]                     # (N, N) bf16

    # ---- GCNConv(50, 16) + ReLU  (project-then-aggregate, lane-dense 128) ----
    p1 = jnp.dot(h.astype(jnp.bfloat16), w1_ref[...],
                 preferred_element_type=jnp.float32)            # (N, 128)
    x1 = jnp.dot(adj, p1.astype(jnp.bfloat16),
                 preferred_element_type=jnp.float32) + b1_ref[...]
    x1 = jnp.maximum(x1, 0.0)              # padded columns stay exactly 0

    # ---- GCNConv(16, 1), padded to 128 output lanes ---------------------------
    p2 = jnp.dot(x1.astype(jnp.bfloat16), w2_ref[...],
                 preferred_element_type=jnp.float32)            # (N, 128)
    x2 = jnp.dot(adj, p2.astype(jnp.bfloat16),
                 preferred_element_type=jnp.float32) + b2_ref[...]

    # ---- Softmax(dim=1) on a width-1 feature axis -----------------------------
    # exp(x - max(x)) / sum(exp(x - max(x))) == 1.0 exactly for one element;
    # keep the data dependency on x2 (NaN/Inf propagate exactly like PyTorch
    # softmax of a single element) but skip the redundant max / sum / divide.
    # Lane-dense (N, 128) slab store (unmasked vst); wrapper slices column 0.
    out_ref[...] = jnp.exp(x2 - x2)


def build_normalized_adj(edge_index, num_nodes):
    """Dense A_hat = D^-1/2 (A + I) D^-1/2, replicating PyG GCNConv defaults."""
    src = edge_index[0]
    dst = edge_index[1]
    loops = jnp.arange(num_nodes, dtype=edge_index.dtype)
    src = jnp.concatenate([src, loops])
    dst = jnp.concatenate([dst, loops])
    deg = jnp.zeros((num_nodes,), jnp.float32).at[dst].add(1.0)
    dinv = jnp.where(deg > 0, 1.0 / jnp.sqrt(deg), 0.0)
    norm = dinv[src] * dinv[dst]
    # messages flow source -> target: out[i] = sum_{j->i} norm_ij * x[j]
    adj = jnp.zeros((num_nodes, num_nodes), jnp.float32).at[dst, src].add(norm)
    return adj


def _reorder_pad_gates(w, Hp=H_PAD, H=HIDDEN):
    """PyTorch gate-stacked rows [i, f, g, o] -> [i, f, o, g], each block zero-padded H->Hp."""
    blocks = [w[0:H], w[H:2 * H], w[3 * H:4 * H], w[2 * H:3 * H]]   # i, f, o, g
    pad_width = ((0, Hp - H),) + ((0, 0),) * (w.ndim - 1)
    return jnp.concatenate([jnp.pad(b, pad_width) for b in blocks], axis=0)


def lstm_gcn_forward(data, edge_index, params):
    T, N, _ = data.shape
    adj = build_normalized_adj(edge_index, N)

    # Pre-transposed, gate-reordered, zero-padded LSTM weights (lane-dense).
    wih = _reorder_pad_gates(params["w_ih"])                      # (4Hp, IN_F)
    whh = _reorder_pad_gates(params["w_hh"])                      # (4Hp, H)
    whh = jnp.pad(whh, ((0, 0), (0, H_PAD - HIDDEN)))             # (4Hp, Hp)
    bias = _reorder_pad_gates(
        (params["b_ih"] + params["b_hh"])[:, None])[:, 0]         # (4Hp,)

    # GCN weights/biases zero-padded to a lane-dense 128-wide tail so x1/x2 and
    # the output slab avoid masked vst.msk partial stores.
    w1 = jnp.zeros((H_PAD, LANE), jnp.float32).at[:HIDDEN, :GC1].set(params["w1"])
    b1 = jnp.zeros((1, LANE), jnp.float32).at[0, :GC1].set(params["b1"])
    w2 = jnp.zeros((LANE, LANE), jnp.float32).at[:GC1, :GC2].set(params["w2"])
    b2 = jnp.zeros((1, LANE), jnp.float32).at[0, :GC2].set(params["b2"])

    args = (
        data.reshape(T * N, IN_F).astype(jnp.float32),            # time-major rows
        wih.T.astype(jnp.float32),                                # (IN_F, 4Hp)  VPU input proj
        whh.T.astype(jnp.bfloat16),                               # (Hp, 4Hp)    bf16 at the dot
        bias.reshape(1, 4 * H_PAD).astype(jnp.float32),
        adj.astype(jnp.bfloat16),                                 # (N, N)       bf16 at the dot
        w1.astype(jnp.bfloat16),
        b1,
        w2.astype(jnp.bfloat16),
        b2,
    )

    kernel = functools.partial(lstm_gcn_kernel, seq_len=T, num_nodes=N)
    vmem = pl.BlockSpec(memory_space=pltpu.MemorySpace.VMEM)
    # TODO(synk): batch many graphs / time-windows on a leading "parallel" grid
    # axis (amortizes launch + DMA overhead and shards across v7x's 2 TensorCores);
    # for large N, tile A_hat with gridded BlockSpecs (or pl.ANY + manual DMA) and
    # raise pltpu.CompilerParams(vmem_limit_bytes=...) past the 16/32 MiB defaults.
    out = pl.pallas_call(
        kernel,
        out_shape=jax.ShapeDtypeStruct((N, LANE), jnp.float32),
        in_specs=[vmem] * len(args),
        out_specs=vmem,
    )(*args)
    return out[:, :GC2]                                           # (N, 1)


def init_params(key):
    """Deterministic synthetic parameters with the module's shapes."""
    ks = jax.random.split(key, 8)
    k = 1.0 / jnp.sqrt(jnp.float32(HIDDEN))   # PyTorch LSTM uniform(-k, k)
    params = {
        "w_ih": jax.random.uniform(ks[0], (4 * HIDDEN, IN_F), jnp.float32, -k, k),
        "w_hh": jax.random.uniform(ks[1], (4 * HIDDEN, HIDDEN), jnp.float32, -k, k),
        "b_ih": jax.random.uniform(ks[2], (4 * HIDDEN,), jnp.float32, -k, k),
        "b_hh": jax.random.uniform(ks[3], (4 * HIDDEN,), jnp.float32, -k, k),
        # GCNConv weights (glorot-style scale), bias zeros (PyG default)
        "w1": jax.random.normal(ks[4], (HIDDEN, GC1), jnp.float32)
              * jnp.sqrt(2.0 / (HIDDEN + GC1)),
        "b1": jnp.zeros((GC1,), jnp.float32),
        "w2": jax.random.normal(ks[5], (GC1, GC2), jnp.float32)
              * jnp.sqrt(2.0 / (GC1 + GC2)),
        "b2": jnp.zeros((GC2,), jnp.float32),
    }
    return params


if __name__ == "__main__":
    key = jax.random.PRNGKey(0)
    k_data, k_params = jax.random.split(key)

    T, N = 8, 16  # seq_len=8, num_nodes=16
    data = jax.random.normal(k_data, (T, N, IN_F), jnp.float32)

    # deterministic bidirectional ring graph: (i -> i+1) and (i+1 -> i)
    i = jnp.arange(N, dtype=jnp.int32)
    src = jnp.concatenate([i, (i + 1) % N])
    dst = jnp.concatenate([(i + 1) % N, i])
    edge_index = jnp.stack([src, dst], axis=0)   # (2, 2N)

    params = init_params(k_params)
    out = lstm_gcn_forward(data, edge_index, params)
    out = jax.block_until_ready(out)

    assert out.shape == (N, 1)
    assert bool(jnp.all(jnp.isfinite(out)))
    print("KERNEL_OK")
</pallas_src>

<mosaic_0001>
module attributes {stable_mosaic.version = 11 : i64} {
  func.func @lstm_gcn_kernel(%arg0: memref<128x2xf32, #tpu.memory_space<vmem>>, %arg1: memref<2x512xf32, #tpu.memory_space<vmem>>, %arg2: memref<128x512xbf16, #tpu.memory_space<vmem>>, %arg3: memref<1x512xf32, #tpu.memory_space<vmem>>, %arg4: memref<16x16xbf16, #tpu.memory_space<vmem>>, %arg5: memref<128x128xbf16, #tpu.memory_space<vmem>>, %arg6: memref<1x128xf32, #tpu.memory_space<vmem>>, %arg7: memref<128x128xbf16, #tpu.memory_space<vmem>>, %arg8: memref<1x128xf32, #tpu.memory_space<vmem>>, %arg9: memref<16x128xf32, #tpu.memory_space<vmem>>) attributes {dimension_semantics = [], scalar_prefetch = 0 : i64, scratch_operands = 0 : i64, tpu.core_type = #tpu.core_type<tc>} {
    %c0 = arith.constant 0 : index
    %c0_0 = arith.constant 0 : index
    %0 = vector.load %arg0[%c0, %c0_0] : memref<128x2xf32, #tpu.memory_space<vmem>>, vector<128x2xf32>
    %c0_1 = arith.constant 0 : index
    %c0_2 = arith.constant 0 : index
    %1 = vector.load %arg1[%c0_1, %c0_2] : memref<2x512xf32, #tpu.memory_space<vmem>>, vector<2x512xf32>
    %2 = vector.extract_strided_slice %0 {offsets = [0, 0], sizes = [128, 1], strides = [1, 1]} : vector<128x2xf32> to vector<128x1xf32>
    %3 = vector.extract_strided_slice %1 {offsets = [0, 0], sizes = [1, 512], strides = [1, 1]} : vector<2x512xf32> to vector<1x512xf32>
    %4 = vector.broadcast %2 : vector<128x1xf32> to vector<128x512xf32>
    %5 = vector.broadcast %3 : vector<1x512xf32> to vector<128x512xf32>
    %6 = arith.mulf %4, %5 : vector<128x512xf32>
    %7 = vector.extract_strided_slice %0 {offsets = [0, 1], sizes = [128, 1], strides = [1, 1]} : vector<128x2xf32> to vector<128x1xf32>
    %8 = vector.extract_strided_slice %1 {offsets = [1, 0], sizes = [1, 512], strides = [1, 1]} : vector<2x512xf32> to vector<1x512xf32>
    %9 = vector.broadcast %7 : vector<128x1xf32> to vector<128x512xf32>
    %10 = vector.broadcast %8 : vector<1x512xf32> to vector<128x512xf32>
    %11 = arith.mulf %9, %10 : vector<128x512xf32>
    %12 = arith.addf %6, %11 : vector<128x512xf32>
    %c0_3 = arith.constant 0 : index
    %c0_4 = arith.constant 0 : index
    %13 = vector.load %arg3[%c0_3, %c0_4] : memref<1x512xf32, #tpu.memory_space<vmem>>, vector<1x512xf32>
    %14 = vector.broadcast %13 : vector<1x512xf32> to vector<128x512xf32>
    %15 = arith.addf %12, %14 : vector<128x512xf32>
    %c0_5 = arith.constant 0 : index
    %c0_6 = arith.constant 0 : index
    %16 = vector.load %arg2[%c0_5, %c0_6] : memref<128x512xbf16, #tpu.memory_space<vmem>>, vector<128x512xbf16>
    %cst = arith.constant 0.000000e+00 : f32
    %17 = vector.broadcast %cst : f32 to vector<16x128xf32>
    %18 = vector.extract_strided_slice %15 {offsets = [0, 0], sizes = [16, 512], strides = [1, 1]} : vector<128x512xf32> to vector<16x512xf32>
    %19 = vector.extract_strided_slice %18 {offsets = [0, 0], sizes = [16, 384], strides = [1, 1]} : vector<16x512xf32> to vector<16x384xf32>
    %20 = arith.negf %19 : vector<16x384xf32>
    %21 = math.exp %20 : vector<16x384xf32>
    %cst_7 = arith.constant 1.000000e+00 : f32
    %22 = vector.broadcast %cst_7 : f32 to vector<16x384xf32>
    %23 = arith.addf %22, %21 : vector<16x384xf32>
    %24 = arith.divf %22, %23 : vector<16x384xf32>
    %25 = vector.extract_strided_slice %18 {offsets = [0, 384], sizes = [16, 128], strides = [1, 1]} : vector<16x512xf32> to vector<16x128xf32>
    %26 = math.tanh %25 : vector<16x128xf32>
    %27 = vector.extract_strided_slice %24 {offsets = [0, 0], sizes = [16, 128], strides = [1, 1]} : vector<16x384xf32> to vector<16x128xf32>
    %28 = vector.extract_strided_slice %24 {offsets = [0, 128], sizes = [16, 128], strides = [1, 1]} : vector<16x384xf32> to vector<16x128xf32>
    %29 = vector.extract_strided_slice %24 {offsets = [0, 256], sizes = [16, 128], strides = [1, 1]} : vector<16x384xf32> to vector<16x128xf32>
    %30 = arith.mulf %28, %17 : vector<16x128xf32>
    %31 = arith.mulf %27, %26 : vector<16x128xf32>
    %32 = arith.addf %30, %31 : vector<16x128xf32>
    %33 = math.tanh %32 : vector<16x128xf32>
    %34 = arith.mulf %29, %33 : vector<16x128xf32>
    %35 = vector.extract_strided_slice %15 {offsets = [16, 0], sizes = [16, 512], strides = [1, 1]} : vector<128x512xf32> to vector<16x512xf32>
    %36 = arith.truncf %34 : vector<16x128xf32> to vector<16x128xbf16>
    %cst_8 = arith.constant dense<0.000000e+00> : vector<16x512xf32>
    %37 = tpu.matmul %36, %16, %cst_8 {dimension_numbers = #tpu.dot_dimension_numbers<[1], [0], [0], [1], [0, 0, 1, 1], [], []>} : vector<16x128xbf16>, vector<128x512xbf16>, vector<16x512xf32> -> vector<16x512xf32>
    %38 = arith.addf %35, %37 : vector<16x512xf32>
    %39 = vector.extract_strided_slice %38 {offsets = [0, 0], sizes = [16, 384], strides = [1, 1]} : vector<16x512xf32> to vector<16x384xf32>
    %40 = arith.negf %39 : vector<16x384xf32>
    %41 = math.exp %40 : vector<16x384xf32>
    %cst_9 = arith.constant 1.000000e+00 : f32
    %42 = vector.broadcast %cst_9 : f32 to vector<16x384xf32>
    %43 = arith.addf %42, %41 : vector<16x384xf32>
    %44 = arith.divf %42, %43 : vector<16x384xf32>
    %45 = vector.extract_strided_slice %38 {offsets = [0, 384], sizes = [16, 128], strides = [1, 1]} : vector<16x512xf32> to vector<16x128xf32>
    %46 = math.tanh %45 : vector<16x128xf32>
    %47 = vector.extract_strided_slice %44 {offsets = [0, 0], sizes = [16, 128], strides = [1, 1]} : vector<16x384xf32> to vector<16x128xf32>
    %48 = vector.extract_strided_slice %44 {offsets = [0, 128], sizes = [16, 128], strides = [1, 1]} : vector<16x384xf32> to vector<16x128xf32>
    %49 = vector.extract_strided_slice %44 {offsets = [0, 256], sizes = [16, 128], strides = [1, 1]} : vector<16x384xf32> to vector<16x128xf32>
    %50 = arith.mulf %48, %32 : vector<16x128xf32>
    %51 = arith.mulf %47, %46 : vector<16x128xf32>
    %52 = arith.addf %50, %51 : vector<16x128xf32>
    %53 = math.tanh %52 : vector<16x128xf32>
    %54 = arith.mulf %49, %53 : vector<16x128xf32>
    %55 = vector.extract_strided_slice %15 {offsets = [32, 0], sizes = [16, 512], strides = [1, 1]} : vector<128x512xf32> to vector<16x512xf32>
    %56 = arith.truncf %54 : vector<16x128xf32> to vector<16x128xbf16>
    %cst_10 = arith.constant dense<0.000000e+00> : vector<16x512xf32>
    %57 = tpu.matmul %56, %16, %cst_10 {dimension_numbers = #tpu.dot_dimension_numbers<[1], [0], [0], [1], [0, 0, 1, 1], [], []>} : vector<16x128xbf16>, vector<128x512xbf16>, vector<16x512xf32> -> vector<16x512xf32>
    %58 = arith.addf %55, %57 : vector<16x512xf32>
    %59 = vector.extract_strided_slice %58 {offsets = [0, 0], sizes = [16, 384], strides = [1, 1]} : vector<16x512xf32> to vector<16x384xf32>
    %60 = arith.negf %59 : vector<16x384xf32>
    %61 = math.exp %60 : vector<16x384xf32>
    %cst_11 = arith.constant 1.000000e+00 : f32
    %62 = vector.broadcast %cst_11 : f32 to vector<16x384xf32>
    %63 = arith.addf %62, %61 : vector<16x384xf32>
    %64 = arith.divf %62, %63 : vector<16x384xf32>
    %65 = vector.extract_strided_slice %58 {offsets = [0, 384], sizes = [16, 128], strides = [1, 1]} : vector<16x512xf32> to vector<16x128xf32>
    %66 = math.tanh %65 : vector<16x128xf32>
    %67 = vector.extract_strided_slice %64 {offsets = [0, 0], sizes = [16, 128], strides = [1, 1]} : vector<16x384xf32> to vector<16x128xf32>
    %68 = vector.extract_strided_slice %64 {offsets = [0, 128], sizes = [16, 128], strides = [1, 1]} : vector<16x384xf32> to vector<16x128xf32>
    %69 = vector.extract_strided_slice %64 {offsets = [0, 256], sizes = [16, 128], strides = [1, 1]} : vector<16x384xf32> to vector<16x128xf32>
    %70 = arith.mulf %68, %52 : vector<16x128xf32>
    %71 = arith.mulf %67, %66 : vector<16x128xf32>
    %72 = arith.addf %70, %71 : vector<16x128xf32>
    %73 = math.tanh %72 : vector<16x128xf32>
    %74 = arith.mulf %69, %73 : vector<16x128xf32>
    %75 = vector.extract_strided_slice %15 {offsets = [48, 0], sizes = [16, 512], strides = [1, 1]} : vector<128x512xf32> to vector<16x512xf32>
    %76 = arith.truncf %74 : vector<16x128xf32> to vector<16x128xbf16>
    %cst_12 = arith.constant dense<0.000000e+00> : vector<16x512xf32>
    %77 = tpu.matmul %76, %16, %cst_12 {dimension_numbers = #tpu.dot_dimension_numbers<[1], [0], [0], [1], [0, 0, 1, 1], [], []>} : vector<16x128xbf16>, vector<128x512xbf16>, vector<16x512xf32> -> vector<16x512xf32>
    %78 = arith.addf %75, %77 : vector<16x512xf32>
    %79 = vector.extract_strided_slice %78 {offsets = [0, 0], sizes = [16, 384], strides = [1, 1]} : vector<16x512xf32> to vector<16x384xf32>
    %80 = arith.negf %79 : vector<16x384xf32>
    %81 = math.exp %80 : vector<16x384xf32>
    %cst_13 = arith.constant 1.000000e+00 : f32
    %82 = vector.broadcast %cst_13 : f32 to vector<16x384xf32>
    %83 = arith.addf %82, %81 : vector<16x384xf32>
    %84 = arith.divf %82, %83 : vector<16x384xf32>
    %85 = vector.extract_strided_slice %78 {offsets = [0, 384], sizes = [16, 128], strides = [1, 1]} : vector<16x512xf32> to vector<16x128xf32>
    %86 = math.tanh %85 : vector<16x128xf32>
    %87 = vector.extract_strided_slice %84 {offsets = [0, 0], sizes = [16, 128], strides = [1, 1]} : vector<16x384xf32> to vector<16x128xf32>
    %88 = vector.extract_strided_slice %84 {offsets = [0, 128], sizes = [16, 128], strides = [1, 1]} : vector<16x384xf32> to vector<16x128xf32>
    %89 = vector.extract_strided_slice %84 {offsets = [0, 256], sizes = [16, 128], strides = [1, 1]} : vector<16x384xf32> to vector<16x128xf32>
    %90 = arith.mulf %88, %72 : vector<16x128xf32>
    %91 = arith.mulf %87, %86 : vector<16x128xf32>
    %92 = arith.addf %90, %91 : vector<16x128xf32>
    %93 = math.tanh %92 : vector<16x128xf32>
    %94 = arith.mulf %89, %93 : vector<16x128xf32>
    %95 = vector.extract_strided_slice %15 {offsets = [64, 0], sizes = [16, 512], strides = [1, 1]} : vector<128x512xf32> to vector<16x512xf32>
    %96 = arith.truncf %94 : vector<16x128xf32> to vector<16x128xbf16>
    %cst_14 = arith.constant dense<0.000000e+00> : vector<16x512xf32>
    %97 = tpu.matmul %96, %16, %cst_14 {dimension_numbers = #tpu.dot_dimension_numbers<[1], [0], [0], [1], [0, 0, 1, 1], [], []>} : vector<16x128xbf16>, vector<128x512xbf16>, vector<16x512xf32> -> vector<16x512xf32>
    %98 = arith.addf %95, %97 : vector<16x512xf32>
    %99 = vector.extract_strided_slice %98 {offsets = [0, 0], sizes = [16, 384], strides = [1, 1]} : vector<16x512xf32> to vector<16x384xf32>
    %100 = arith.negf %99 : vector<16x384xf32>
    %101 = math.exp %100 : vector<16x384xf32>
    %cst_15 = arith.constant 1.000000e+00 : f32
    %102 = vector.broadcast %cst_15 : f32 to vector<16x384xf32>
    %103 = arith.addf %102, %101 : vector<16x384xf32>
    %104 = arith.divf %102, %103 : vector<16x384xf32>
    %105 = vector.extract_strided_slice %98 {offsets = [0, 384], sizes = [16, 128], strides = [1, 1]} : vector<16x512xf32> to vector<16x128xf32>
    %106 = math.tanh %105 : vector<16x128xf32>
    %107 = vector.extract_strided_slice %104 {offsets = [0, 0], sizes = [16, 128], strides = [1, 1]} : vector<16x384xf32> to vector<16x128xf32>
    %108 = vector.extract_strided_slice %104 {offsets = [0, 128], sizes = [16, 128], strides = [1, 1]} : vector<16x384xf32> to vector<16x128xf32>
    %109 = vector.extract_strided_slice %104 {offsets = [0, 256], sizes = [16, 128], strides = [1, 1]} : vector<16x384xf32> to vector<16x128xf32>
    %110 = arith.mulf %108, %92 : vector<16x128xf32>
    %111 = arith.mulf %107, %106 : vector<16x128xf32>
    %112 = arith.addf %110, %111 : vector<16x128xf32>
    %113 = math.tanh %112 : vector<16x128xf32>
    %114 = arith.mulf %109, %113 : vector<16x128xf32>
    %115 = vector.extract_strided_slice %15 {offsets = [80, 0], sizes = [16, 512], strides = [1, 1]} : vector<128x512xf32> to vector<16x512xf32>
    %116 = arith.truncf %114 : vector<16x128xf32> to vector<16x128xbf16>
    %cst_16 = arith.constant dense<0.000000e+00> : vector<16x512xf32>
    %117 = tpu.matmul %116, %16, %cst_16 {dimension_numbers = #tpu.dot_dimension_numbers<[1], [0], [0], [1], [0, 0, 1, 1], [], []>} : vector<16x128xbf16>, vector<128x512xbf16>, vector<16x512xf32> -> vector<16x512xf32>
    %118 = arith.addf %115, %117 : vector<16x512xf32>
    %119 = vector.extract_strided_slice %118 {offsets = [0, 0], sizes = [16, 384], strides = [1, 1]} : vector<16x512xf32> to vector<16x384xf32>
    %120 = arith.negf %119 : vector<16x384xf32>
    %121 = math.exp %120 : vector<16x384xf32>
    %cst_17 = arith.constant 1.000000e+00 : f32
    %122 = vector.broadcast %cst_17 : f32 to vector<16x384xf32>
    %123 = arith.addf %122, %121 : vector<16x384xf32>
    %124 = arith.divf %122, %123 : vector<16x384xf32>
    %125 = vector.extract_strided_slice %118 {offsets = [0, 384], sizes = [16, 128], strides = [1, 1]} : vector<16x512xf32> to vector<16x128xf32>
    %126 = math.tanh %125 : vector<16x128xf32>
    %127 = vector.extract_strided_slice %124 {offsets = [0, 0], sizes = [16, 128], strides = [1, 1]} : vector<16x384xf32> to vector<16x128xf32>
    %128 = vector.extract_strided_slice %124 {offsets = [0, 128], sizes = [16, 128], strides = [1, 1]} : vector<16x384xf32> to vector<16x128xf32>
    %129 = vector.extract_strided_slice %124 {offsets = [0, 256], sizes = [16, 128], strides = [1, 1]} : vector<16x384xf32> to vector<16x128xf32>
    %130 = arith.mulf %128, %112 : vector<16x128xf32>
    %131 = arith.mulf %127, %126 : vector<16x128xf32>
    %132 = arith.addf %130, %131 : vector<16x128xf32>
    %133 = math.tanh %132 : vector<16x128xf32>
    %134 = arith.mulf %129, %133 : vector<16x128xf32>
    %135 = vector.extract_strided_slice %15 {offsets = [96, 0], sizes = [16, 512], strides = [1, 1]} : vector<128x512xf32> to vector<16x512xf32>
    %136 = arith.truncf %134 : vector<16x128xf32> to vector<16x128xbf16>
    %cst_18 = arith.constant dense<0.000000e+00> : vector<16x512xf32>
    %137 = tpu.matmul %136, %16, %cst_18 {dimension_numbers = #tpu.dot_dimension_numbers<[1], [0], [0], [1], [0, 0, 1, 1], [], []>} : vector<16x128xbf16>, vector<128x512xbf16>, vector<16x512xf32> -> vector<16x512xf32>
    %138 = arith.addf %135, %137 : vector<16x512xf32>
    %139 = vector.extract_strided_slice %138 {offsets = [0, 0], sizes = [16, 384], strides = [1, 1]} : vector<16x512xf32> to vector<16x384xf32>
    %140 = arith.negf %139 : vector<16x384xf32>
    %141 = math.exp %140 : vector<16x384xf32>
    %cst_19 = arith.constant 1.000000e+00 : f32
    %142 = vector.broadcast %cst_19 : f32 to vector<16x384xf32>
    %143 = arith.addf %142, %141 : vector<16x384xf32>
    %144 = arith.divf %142, %143 : vector<16x384xf32>
    %145 = vector.extract_strided_slice %138 {offsets = [0, 384], sizes = [16, 128], strides = [1, 1]} : vector<16x512xf32> to vector<16x128xf32>
    %146 = math.tanh %145 : vector<16x128xf32>
    %147 = vector.extract_strided_slice %144 {offsets = [0, 0], sizes = [16, 128], strides = [1, 1]} : vector<16x384xf32> to vector<16x128xf32>
    %148 = vector.extract_strided_slice %144 {offsets = [0, 128], sizes = [16, 128], strides = [1, 1]} : vector<16x384xf32> to vector<16x128xf32>
    %149 = vector.extract_strided_slice %144 {offsets = [0, 256], sizes = [16, 128], strides = [1, 1]} : vector<16x384xf32> to vector<16x128xf32>
    %150 = arith.mulf %148, %132 : vector<16x128xf32>
    %151 = arith.mulf %147, %146 : vector<16x128xf32>
    %152 = arith.addf %150, %151 : vector<16x128xf32>
    %153 = math.tanh %152 : vector<16x128xf32>
    %154 = arith.mulf %149, %153 : vector<16x128xf32>
    %155 = vector.extract_strided_slice %15 {offsets = [112, 0], sizes = [16, 512], strides = [1, 1]} : vector<128x512xf32> to vector<16x512xf32>
    %156 = arith.truncf %154 : vector<16x128xf32> to vector<16x128xbf16>
    %cst_20 = arith.constant dense<0.000000e+00> : vector<16x512xf32>
    %157 = tpu.matmul %156, %16, %cst_20 {dimension_numbers = #tpu.dot_dimension_numbers<[1], [0], [0], [1], [0, 0, 1, 1], [], []>} : vector<16x128xbf16>, vector<128x512xbf16>, vector<16x512xf32> -> vector<16x512xf32>
    %158 = arith.addf %155, %157 : vector<16x512xf32>
    %159 = vector.extract_strided_slice %158 {offsets = [0, 0], sizes = [16, 384], strides = [1, 1]} : vector<16x512xf32> to vector<16x384xf32>
    %160 = arith.negf %159 : vector<16x384xf32>
    %161 = math.exp %160 : vector<16x384xf32>
    %cst_21 = arith.constant 1.000000e+00 : f32
    %162 = vector.broadcast %cst_21 : f32 to vector<16x384xf32>
    %163 = arith.addf %162, %161 : vector<16x384xf32>
    %164 = arith.divf %162, %163 : vector<16x384xf32>
    %165 = vector.extract_strided_slice %158 {offsets = [0, 384], sizes = [16, 128], strides = [1, 1]} : vector<16x512xf32> to vector<16x128xf32>
    %166 = math.tanh %165 : vector<16x128xf32>
    %167 = vector.extract_strided_slice %164 {offsets = [0, 0], sizes = [16, 128], strides = [1, 1]} : vector<16x384xf32> to vector<16x128xf32>
    %168 = vector.extract_strided_slice %164 {offsets = [0, 128], sizes = [16, 128], strides = [1, 1]} : vector<16x384xf32> to vector<16x128xf32>
    %169 = vector.extract_strided_slice %164 {offsets = [0, 256], sizes = [16, 128], strides = [1, 1]} : vector<16x384xf32> to vector<16x128xf32>
    %170 = arith.mulf %168, %152 : vector<16x128xf32>
    %171 = arith.mulf %167, %166 : vector<16x128xf32>
    %172 = arith.addf %170, %171 : vector<16x128xf32>
    %173 = math.tanh %172 : vector<16x128xf32>
    %174 = arith.mulf %169, %173 : vector<16x128xf32>
    %c0_22 = arith.constant 0 : index
    %c0_23 = arith.constant 0 : index
    %175 = vector.load %arg4[%c0_22, %c0_23] : memref<16x16xbf16, #tpu.memory_space<vmem>>, vector<16x16xbf16>
    %176 = arith.truncf %174 : vector<16x128xf32> to vector<16x128xbf16>
    %c0_24 = arith.constant 0 : index
    %c0_25 = arith.constant 0 : index
    %177 = vector.load %arg5[%c0_24, %c0_25] : memref<128x128xbf16, #tpu.memory_space<vmem>>, vector<128x128xbf16>
    %cst_26 = arith.constant dense<0.000000e+00> : vector<16x128xf32>
    %178 = tpu.matmul %176, %177, %cst_26 {dimension_numbers = #tpu.dot_dimension_numbers<[1], [0], [0], [1], [0, 0, 1, 1], [], []>} : vector<16x128xbf16>, vector<128x128xbf16>, vector<16x128xf32> -> vector<16x128xf32>
    %179 = arith.truncf %178 : vector<16x128xf32> to vector<16x128xbf16>
    %cst_27 = arith.constant dense<0.000000e+00> : vector<16x128xf32>
    %180 = tpu.matmul %175, %179, %cst_27 {dimension_numbers = #tpu.dot_dimension_numbers<[1], [0], [0], [1], [0, 0, 1, 1], [], []>} : vector<16x16xbf16>, vector<16x128xbf16>, vector<16x128xf32> -> vector<16x128xf32>
    %c0_28 = arith.constant 0 : index
    %c0_29 = arith.constant 0 : index
    %181 = vector.load %arg6[%c0_28, %c0_29] : memref<1x128xf32, #tpu.memory_space<vmem>>, vector<1x128xf32>
    %182 = vector.broadcast %181 : vector<1x128xf32> to vector<16x128xf32>
    %183 = arith.addf %180, %182 : vector<16x128xf32>
    %cst_30 = arith.constant 0.000000e+00 : f32
    %184 = vector.broadcast %cst_30 : f32 to vector<16x128xf32>
    %185 = arith.maximumf %183, %184 : vector<16x128xf32>
    %186 = arith.truncf %185 : vector<16x128xf32> to vector<16x128xbf16>
    %c0_31 = arith.constant 0 : index
    %c0_32 = arith.constant 0 : index
    %187 = vector.load %arg7[%c0_31, %c0_32] : memref<128x128xbf16, #tpu.memory_space<vmem>>, vector<128x128xbf16>
    %cst_33 = arith.constant dense<0.000000e+00> : vector<16x128xf32>
    %188 = tpu.matmul %186, %187, %cst_33 {dimension_numbers = #tpu.dot_dimension_numbers<[1], [0], [0], [1], [0, 0, 1, 1], [], []>} : vector<16x128xbf16>, vector<128x128xbf16>, vector<16x128xf32> -> vector<16x128xf32>
    %189 = arith.truncf %188 : vector<16x128xf32> to vector<16x128xbf16>
    %cst_34 = arith.constant dense<0.000000e+00> : vector<16x128xf32>
    %190 = tpu.matmul %175, %189, %cst_34 {dimension_numbers = #tpu.dot_dimension_numbers<[1], [0], [0], [1], [0, 0, 1, 1], [], []>} : vector<16x16xbf16>, vector<16x128xbf16>, vector<16x128xf32> -> vector<16x128xf32>
    %c0_35 = arith.constant 0 : index
    %c0_36 = arith.constant 0 : index
    %191 = vector.load %arg8[%c0_35, %c0_36] : memref<1x128xf32, #tpu.memory_space<vmem>>, vector<1x128xf32>
    %192 = vector.broadcast %191 : vector<1x128xf32> to vector<16x128xf32>
    %193 = arith.addf %190, %192 : vector<16x128xf32>
    %194 = arith.subf %193, %193 : vector<16x128xf32>
    %195 = math.exp %194 : vector<16x128xf32>
    %c0_37 = arith.constant 0 : index
    %c0_38 = arith.constant 0 : index
    %196 = vector.load %arg9[%c0_37, %c0_38] : memref<16x128xf32, #tpu.memory_space<vmem>>, vector<16x128xf32>
    tpu.vector_store %arg9[%c0_37, %c0_38], %195 {strides = array<i32>} : memref<16x128xf32, #tpu.memory_space<vmem>>, vector<16x128xf32>,
    return
  }
}

</mosaic_0001>

<llo_original>
// kernel: tpu_custom_call.1
$region0: #{tpu_custom_call.1}
  #allocation0 [shape = 'u32[]', space=smem, size = 0x4, offset = 0x4, fixed_abs, tag = 'smem constant byte address 0x4 - core index']
  #allocation1 [shape = 'u32[72,128]{1,0:T(1,128)}', space=vmem, size = 0x9000, scoped, tag = 'internal scratch']
  %s0 = inlined_call_operand.vmem [shape: f32[128,2], index: 0, kind: input, shape index: {}]
  %s1 = inlined_call_operand.hbm [shape: f32[2,512], index: 1, kind: input, shape index: {}]
  %s2 = inlined_call_operand.hbm [shape: bf16[128,512], index: 2, kind: input, shape index: {}]
  %s3 = inlined_call_operand.hbm [shape: f32[1,512], index: 3, kind: input, shape index: {}]
  %s4 = inlined_call_operand.hbm [shape: bf16[16,16], index: 4, kind: input, shape index: {}]
  %s5 = inlined_call_operand.vmem [shape: bf16[128,128], index: 5, kind: input, shape index: {}]
  %s6 = inlined_call_operand.vmem [shape: f32[1,128], index: 6, kind: input, shape index: {}]
  %s7 = inlined_call_operand.vmem [shape: bf16[128,128], index: 7, kind: input, shape index: {}]
  %s8 = inlined_call_operand.vmem [shape: f32[1,128], index: 8, kind: input, shape index: {}]
  %s9 = inlined_call_operand.hbm [shape: f32[16,128], index: 9, kind: output, shape index: {}]
  %s10 = sld [smem:[#allocation0]]
  $region62: #{tpu_custom_call.1} parent=0
    _
  %s12 = ssub.s32 1, %s10
  %s13 = scalar_select 0, %s12, %s10
  $region1: #{tpu_custom_call.1} parent=0
    #allocation2 [shape = 'u8[4096]{0}', space=vmem, size = 0x1000, scoped, tag = 'input window, operand 1, single buffered']
    #allocation3 [shape = 's32[1]{0}', space=sflag, size = 0x4, scoped, tag = 'scoped memory for tpu_custom_call.1']
    #allocation4 [shape = 's32[1]{0}', space=sflag, size = 0x4, scoped, tag = 'scoped memory for tpu_custom_call.1']
    #allocation5 [shape = 'u8[131072]{0}', space=vmem, size = 0x20000, scoped, tag = 'input window, operand 2, single buffered']
    #allocation6 [shape = 's32[1]{0}', space=sflag, size = 0x4, scoped, tag = 'scoped memory for tpu_custom_call.1']
    #allocation7 [shape = 'u8[2048]{0}', space=vmem, size = 0x800, scoped, tag = 'input window, operand 3, single buffered']
    #allocation8 [shape = 'u8[4096]{0}', space=vmem, size = 0x1000, scoped, tag = 'input window, operand 4, single buffered']
    #allocation9 [shape = 's32[1]{0}', space=sflag, size = 0x4, scoped, tag = 'scoped memory for tpu_custom_call.1']
    #allocation10 [shape = 'u8[8192]{0}', space=vmem, size = 0x2000, scoped, tag = 'output window, operand 0, single buffered']
    %14 = vsyncpa [#allocation3], 0
    %15 = vsyncpa [#allocation6], 0
    %16 = vsyncpa [#allocation9], 0
    %17 = vsyncpa [#allocation4], 0
    // Predicated region
    $region2: #{tpu_custom_call.1} parent=1 // pred_check
      _
    $region3: #{tpu_custom_call.1} parent=1 // pred_check_branch
      %19 = sbr.rel (0) target = $region5
    $region4: #{tpu_custom_call.1} parent=1 // pred_region
      _
    $region5: #{tpu_custom_call.1} parent=1 // pred_fallthru
      _
    // Predicated region
    $region6: #{tpu_custom_call.1} parent=1 // pred_check
      _
    $region7: #{tpu_custom_call.1} parent=1 // pred_check_branch
      %21 = sbr.rel (0) target = $region9
    $region8: #{tpu_custom_call.1} parent=1 // pred_region
      %23 = vsyncadd [#allocation3], 0
      %s25 = sshll.u32 %s1, 4
      %s26 = int_to_ptr.hbm [resolvable:$true] %s25
      %s27 = sshll.u32 [#allocation2], 4
      %s28 = int_to_ptr.vmem [resolvable:$true] %s27
      %30 = dma.hbm_to_vmem [thread:$0]  %s26, 128, %s28, [#allocation3]
    $region9: #{tpu_custom_call.1} parent=1 // pred_fallthru
      _
    // Predicated region
    $region10: #{tpu_custom_call.1} parent=1 // pred_check
      _
    $region11: #{tpu_custom_call.1} parent=1 // pred_check_branch
      %32 = sbr.rel (0) target = $region13
    $region12: #{tpu_custom_call.1} parent=1 // pred_region
      %34 = vsyncadd [#allocation6], 0
      %s35 = sshll.u32 %s2, 4
      %s36 = int_to_ptr.hbm [resolvable:$true] %s35
      %s37 = sshll.u32 [#allocation5], 4
      %s38 = int_to_ptr.vmem [resolvable:$true] %s37
      %43 = dma.hbm_to_vmem [thread:$0]  %s36, 4096, %s38, [#allocation6], 256, 256, 16
    $region13: #{tpu_custom_call.1} parent=1 // pred_fallthru
      _
    // Predicated region
    $region14: #{tpu_custom_call.1} parent=1 // pred_check
      _
    $region15: #{tpu_custom_call.1} parent=1 // pred_check_branch
      %45 = sbr.rel (0) target = $region17
    $region16: #{tpu_custom_call.1} parent=1 // pred_region
      %47 = vsyncadd [#allocation6], 0
      %s49 = sshll.u32 %s3, 4
      %s50 = int_to_ptr.hbm [resolvable:$true] %s49
      %s51 = sshll.u32 [#allocation7], 4
      %s52 = int_to_ptr.vmem [resolvable:$true] %s51
      %54 = dma.hbm_to_vmem [thread:$0]  %s50, 64, %s52, [#allocation6]
    $region17: #{tpu_custom_call.1} parent=1 // pred_fallthru
      _
    // Predicated region
    $region18: #{tpu_custom_call.1} parent=1 // pred_check
      _
    $region19: #{tpu_custom_call.1} parent=1 // pred_check_branch
      %56 = sbr.rel (0) target = $region21
    $region20: #{tpu_custom_call.1} parent=1 // pred_region
      %58 = vsyncadd [#allocation9], 0
      %s59 = sshll.u32 %s4, 4
      %s60 = int_to_ptr.hbm [resolvable:$true] %s59
      %s61 = sshll.u32 [#allocation8], 4
      %s62 = int_to_ptr.vmem [resolvable:$true] %s61
      %67 = dma.hbm_to_vmem [thread:$0]  %s60, 128, %s62, [#allocation9], 64, 64, 4
    $region21: #{tpu_custom_call.1} parent=1 // pred_fallthru
      _
    // Predicated region
    $region22: #{tpu_custom_call.1} parent=1 // pred_check
      _
    $region23: #{tpu_custom_call.1} parent=1 // pred_check_branch
      %69 = sbr.rel (0) target = $region25
    $region24: #{tpu_custom_call.1} parent=1 // pred_region
      _
    $region25: #{tpu_custom_call.1} parent=1 // pred_fallthru
      _
    // Predicated region
    $region26: #{tpu_custom_call.1} parent=1 // pred_check
      _
    $region27: #{tpu_custom_call.1} parent=1 // pred_check_branch
      %71 = sbr.rel (0) target = $region29
    $region28: #{tpu_custom_call.1} parent=1 // pred_region
      _
    $region29: #{tpu_custom_call.1} parent=1 // pred_fallthru
      _
    // Predicated region
    $region30: #{tpu_custom_call.1} parent=1 // pred_check
      _
    $region31: #{tpu_custom_call.1} parent=1 // pred_check_branch
      %73 = sbr.rel (0) target = $region33
    $region32: #{tpu_custom_call.1} parent=1 // pred_region
      _
    $region33: #{tpu_custom_call.1} parent=1 // pred_fallthru
      _
    // Predicated region
    $region34: #{tpu_custom_call.1} parent=1 // pred_check
      _
    $region35: #{tpu_custom_call.1} parent=1 // pred_check_branch
      %75 = sbr.rel (0) target = $region37
    $region36: #{tpu_custom_call.1} parent=1 // pred_region
      _
    $region37: #{tpu_custom_call.1} parent=1 // pred_fallthru
      _
    // Predicated region
    $region38: #{tpu_custom_call.1} parent=1 // pred_check
      _
    $region39: #{tpu_custom_call.1} parent=1 // pred_check_branch
      %77 = sbr.rel (0) target = $region41
    $region40: #{tpu_custom_call.1} parent=1 // pred_region
      %79 = dma.done [#allocation3], 128
    $region41: #{tpu_custom_call.1} parent=1 // pred_fallthru
      _
    // Predicated region
    $region42: #{tpu_custom_call.1} parent=1 // pred_check
      _
    $region43: #{tpu_custom_call.1} parent=1 // pred_check_branch
      %81 = sbr.rel (0) target = $region45
    $region44: #{tpu_custom_call.1} parent=1 // pred_region
      %83 = dma.done [#allocation6], 4096
    $region45: #{tpu_custom_call.1} parent=1 // pred_fallthru
      _
    // Predicated region
    $region46: #{tpu_custom_call.1} parent=1 // pred_check
      _
    $region47: #{tpu_custom_call.1} parent=1 // pred_check_branch
      %85 = sbr.rel (0) target = $region49
    $region48: #{tpu_custom_call.1} parent=1 // pred_region
      %87 = dma.done [#allocation6], 64
    $region49: #{tpu_custom_call.1} parent=1 // pred_fallthru
      _
    // Predicated region
    $region50: #{tpu_custom_call.1} parent=1 // pred_check
      _
    $region51: #{tpu_custom_call.1} parent=1 // pred_check_branch
      %89 = sbr.rel (0) target = $region53
    $region52: #{tpu_custom_call.1} parent=1 // pred_region
      %91 = dma.done [#allocation9], 128
    $region53: #{tpu_custom_call.1} parent=1 // pred_fallthru
      _
    %v93 = vld [vmem:[%s0] sm:$0xff]
    %v94 = vld [vmem:[%s0 + $0x8] sm:$0xff]
    %v95 = vld [vmem:[%s0 + $0x10] sm:$0xff]
    %v96 = vld [vmem:[%s0 + $0x18] sm:$0xff]
    %v97 = vld [vmem:[%s0 + $0x20] sm:$0xff]
    %v98 = vld [vmem:[%s0 + $0x28] sm:$0xff]
    %v99 = vld [vmem:[%s0 + $0x30] sm:$0xff]
    %v100 = vld [vmem:[%s0 + $0x38] sm:$0xff]
    %v101 = vld [vmem:[%s0 + $0x40] sm:$0xff]
    %v102 = vld [vmem:[%s0 + $0x48] sm:$0xff]
    %v103 = vld [vmem:[%s0 + $0x50] sm:$0xff]
    %v104 = vld [vmem:[%s0 + $0x58] sm:$0xff]
    %v105 = vld [vmem:[%s0 + $0x60] sm:$0xff]
    %v106 = vld [vmem:[%s0 + $0x68] sm:$0xff]
    %v107 = vld [vmem:[%s0 + $0x70] sm:$0xff]
    %v108 = vld [vmem:[%s0 + $0x78] sm:$0xff]
    %v109 = vld [vmem:[#allocation2] sm:$0xff]
    %111 = vset.pattern.permute.xlu0 0
    %112 = vperm.xlu0 %111, %v93
    %v113 = vpop.permute.xlu0 %112
    %116 = vset.pattern.permute.xlu0 0
    %117 = vperm.xlu0 %116, %v94
    %v118 = vpop.permute.xlu0 %117
    %121 = vset.pattern.permute.xlu0 0
    %122 = vperm.xlu0 %121, %v95
    %v123 = vpop.permute.xlu0 %122
    %126 = vset.pattern.permute.xlu0 0
    %127 = vperm.xlu0 %126, %v96
    %v128 = vpop.permute.xlu0 %127
    %131 = vset.pattern.permute.xlu0 0
    %132 = vperm.xlu0 %131, %v97
    %v133 = vpop.permute.xlu0 %132
    %136 = vset.pattern.permute.xlu0 0
    %137 = vperm.xlu0 %136, %v98
    %v138 = vpop.permute.xlu0 %137
    %141 = vset.pattern.permute.xlu0 0
    %142 = vperm.xlu0 %141, %v99
    %v143 = vpop.permute.xlu0 %142
    %146 = vset.pattern.permute.xlu0 0
    %147 = vperm.xlu0 %146, %v100
    %v148 = vpop.permute.xlu0 %147
    %151 = vset.pattern.permute.xlu0 0
    %152 = vperm.xlu0 %151, %v101
    %v153 = vpop.permute.xlu0 %152
    %156 = vset.pattern.permute.xlu0 0
    %157 = vperm.xlu0 %156, %v102
    %v158 = vpop.permute.xlu0 %157
    %161 = vset.pattern.permute.xlu0 0
    %162 = vperm.xlu0 %161, %v103
    %v163 = vpop.permute.xlu0 %162
    %166 = vset.pattern.permute.xlu0 0
    %167 = vperm.xlu0 %166, %v104
    %v168 = vpop.permute.xlu0 %167
    %171 = vset.pattern.permute.xlu0 0
    %172 = vperm.xlu0 %171, %v105
    %v173 = vpop.permute.xlu0 %172
    %176 = vset.pattern.permute.xlu0 0
    %177 = vperm.xlu0 %176, %v106
    %v178 = vpop.permute.xlu0 %177
    %181 = vset.pattern.permute.xlu0 0
    %182 = vperm.xlu0 %181, %v107
    %v183 = vpop.permute.xlu0 %182
    %186 = vset.pattern.permute.xlu0 0
    %187 = vperm.xlu0 %186, %v108
    %v188 = vpop.permute.xlu0 %187
    %v191 = vperm.slane %v109, 0
    %v192 = vperm.slane %v109, 2
    %v193 = vperm.slane %v109, 4
    %v194 = vperm.slane %v109, 6
    %v199 = vperm.slane %v191, 0
    %v200 = vperm.slane %v192, 0
    %v201 = vperm.slane %v193, 0
    %v202 = vperm.slane %v194, 0
    %v203 = vmul.f32 %v113, %v199
    %v204 = vmul.f32 %v113, %v200
    %v205 = vmul.f32 %v113, %v201
    %v206 = vmul.f32 %v113, %v202
    %v207 = vmul.f32 %v118, %v199
    %v208 = vmul.f32 %v118, %v200
    %v209 = vmul.f32 %v118, %v201
    %v210 = vmul.f32 %v118, %v202
    %v211 = vmul.f32 %v123, %v199
    %v212 = vmul.f32 %v123, %v200
    %v213 = vmul.f32 %v123, %v201
    %v214 = vmul.f32 %v123, %v202
    %v215 = vmul.f32 %v128, %v199
    %v216 = vmul.f32 %v128, %v200
    %v217 = vmul.f32 %v128, %v201
    %v218 = vmul.f32 %v128, %v202
    %v219 = vmul.f32 %v133, %v199
    %v220 = vmul.f32 %v133, %v200
    %v221 = vmul.f32 %v133, %v201
    %v222 = vmul.f32 %v133, %v202
    %v223 = vmul.f32 %v138, %v199
    %v224 = vmul.f32 %v138, %v200
    %v225 = vmul.f32 %v138, %v201
    %v226 = vmul.f32 %v138, %v202
    %v227 = vmul.f32 %v143, %v199
    %v228 = vmul.f32 %v143, %v200
    %v229 = vmul.f32 %v143, %v201
    %v230 = vmul.f32 %v143, %v202
    %v231 = vmul.f32 %v148, %v199
    %v232 = vmul.f32 %v148, %v200
    %v233 = vmul.f32 %v148, %v201
    %v234 = vmul.f32 %v148, %v202
    %v235 = vmul.f32 %v153, %v199
    %v236 = vmul.f32 %v153, %v200
    %v237 = vmul.f32 %v153, %v201
    %v238 = vmul.f32 %v153, %v202
    %v239 = vmul.f32 %v158, %v199
    %v240 = vmul.f32 %v158, %v200
    %v241 = vmul.f32 %v158, %v201
    %v242 = vmul.f32 %v158, %v202
    %v243 = vmul.f32 %v163, %v199
    %v244 = vmul.f32 %v163, %v200
    %v245 = vmul.f32 %v163, %v201
    %v246 = vmul.f32 %v163, %v202
    %v247 = vmul.f32 %v168, %v199
    %v248 = vmul.f32 %v168, %v200
    %v249 = vmul.f32 %v168, %v201
    %v250 = vmul.f32 %v168, %v202
    %v251 = vmul.f32 %v173, %v199
    %v252 = vmul.f32 %v173, %v200
    %v253 = vmul.f32 %v173, %v201
    %v254 = vmul.f32 %v173, %v202
    %v255 = vmul.f32 %v178, %v199
    %v256 = vmul.f32 %v178, %v200
    %v257 = vmul.f32 %v178, %v201
    %v258 = vmul.f32 %v178, %v202
    %v259 = vmul.f32 %v183, %v199
    %v260 = vmul.f32 %v183, %v200
    %v261 = vmul.f32 %v183, %v201
    %v262 = vmul.f32 %v183, %v202
    %v263 = vmul.f32 %v188, %v199
    %v264 = vmul.f32 %v188, %v200
    %v265 = vmul.f32 %v188, %v201
    %v266 = vmul.f32 %v188, %v202
    %267 = vset.pattern.permute.xlu0 1
    %268 = vperm.xlu0 %267, %v93
    %v269 = vpop.permute.xlu0 %268
    %271 = vset.pattern.permute.xlu0 1
    %272 = vperm.xlu0 %271, %v94
    %v273 = vpop.permute.xlu0 %272
    %275 = vset.pattern.permute.xlu0 1
    %276 = vperm.xlu0 %275, %v95
    %v277 = vpop.permute.xlu0 %276
    %279 = vset.pattern.permute.xlu0 1
    %280 = vperm.xlu0 %279, %v96
    %v281 = vpop.permute.xlu0 %280
    %283 = vset.pattern.permute.xlu0 1
    %284 = vperm.xlu0 %283, %v97
    %v285 = vpop.permute.xlu0 %284
    %287 = vset.pattern.permute.xlu0 1
    %288 = vperm.xlu0 %287, %v98
    %v289 = vpop.permute.xlu0 %288
    %291 = vset.pattern.permute.xlu0 1
    %292 = vperm.xlu0 %291, %v99
    %v293 = vpop.permute.xlu0 %292
    %295 = vset.pattern.permute.xlu0 1
    %296 = vperm.xlu0 %295, %v100
    %v297 = vpop.permute.xlu0 %296
    %299 = vset.pattern.permute.xlu0 1
    %300 = vperm.xlu0 %299, %v101
    %v301 = vpop.permute.xlu0 %300
    %303 = vset.pattern.permute.xlu0 1
    %304 = vperm.xlu0 %303, %v102
    %v305 = vpop.permute.xlu0 %304
    %307 = vset.pattern.permute.xlu0 1
    %308 = vperm.xlu0 %307, %v103
    %v309 = vpop.permute.xlu0 %308
    %311 = vset.pattern.permute.xlu0 1
    %312 = vperm.xlu0 %311, %v104
    %v313 = vpop.permute.xlu0 %312
    %315 = vset.pattern.permute.xlu0 1
    %316 = vperm.xlu0 %315, %v105
    %v317 = vpop.permute.xlu0 %316
    %319 = vset.pattern.permute.xlu0 1
    %320 = vperm.xlu0 %319, %v106
    %v321 = vpop.permute.xlu0 %320
    %323 = vset.pattern.permute.xlu0 1
    %324 = vperm.xlu0 %323, %v107
    %v325 = vpop.permute.xlu0 %324
    %327 = vset.pattern.permute.xlu0 1
    %328 = vperm.xlu0 %327, %v108
    %v329 = vpop.permute.xlu0 %328
    %v331 = vperm.slane %v109, 1
    %v332 = vperm.slane %v109, 3
    %v333 = vperm.slane %v109, 5
    %v334 = vperm.slane %v109, 7
    %v339 = vperm.slane %v331, 1
    %v340 = vperm.slane %v332, 1
    %v341 = vperm.slane %v333, 1
    %v342 = vperm.slane %v334, 1
    %v343 = vmul.f32 %v269, %v339
    %v344 = vmul.f32 %v269, %v340
    %v345 = vmul.f32 %v269, %v341
    %v346 = vmul.f32 %v269, %v342
    %v347 = vmul.f32 %v273, %v339
    %v348 = vmul.f32 %v273, %v340
    %v349 = vmul.f32 %v273, %v341
    %v350 = vmul.f32 %v273, %v342
    %v351 = vmul.f32 %v277, %v339
    %v352 = vmul.f32 %v277, %v340
    %v353 = vmul.f32 %v277, %v341
    %v354 = vmul.f32 %v277, %v342
    %v355 = vmul.f32 %v281, %v339
    %v356 = vmul.f32 %v281, %v340
    %v357 = vmul.f32 %v281, %v341
    %v358 = vmul.f32 %v281, %v342
    %v359 = vmul.f32 %v285, %v339
    %v360 = vmul.f32 %v285, %v340
    %v361 = vmul.f32 %v285, %v341
    %v362 = vmul.f32 %v285, %v342
    %v363 = vmul.f32 %v289, %v339
    %v364 = vmul.f32 %v289, %v340
    %v365 = vmul.f32 %v289, %v341
    %v366 = vmul.f32 %v289, %v342
    %v367 = vmul.f32 %v293, %v339
    %v368 = vmul.f32 %v293, %v340
    %v369 = vmul.f32 %v293, %v341
    %v370 = vmul.f32 %v293, %v342
    %v371 = vmul.f32 %v297, %v339
    %v372 = vmul.f32 %v297, %v340
    %v373 = vmul.f32 %v297, %v341
    %v374 = vmul.f32 %v297, %v342
    %v375 = vmul.f32 %v301, %v339
    %v376 = vmul.f32 %v301, %v340
    %v377 = vmul.f32 %v301, %v341
    %v378 = vmul.f32 %v301, %v342
    %v379 = vmul.f32 %v305, %v339
    %v380 = vmul.f32 %v305, %v340
    %v381 = vmul.f32 %v305, %v341
    %v382 = vmul.f32 %v305, %v342
    %v383 = vmul.f32 %v309, %v339
    %v384 = vmul.f32 %v309, %v340
    %v385 = vmul.f32 %v309, %v341
    %v386 = vmul.f32 %v309, %v342
    %v387 = vmul.f32 %v313, %v339
    %v388 = vmul.f32 %v313, %v340
    %v389 = vmul.f32 %v313, %v341
    %v390 = vmul.f32 %v313, %v342
    %v391 = vmul.f32 %v317, %v339
    %v392 = vmul.f32 %v317, %v340
    %v393 = vmul.f32 %v317, %v341
    %v394 = vmul.f32 %v317, %v342
    %v395 = vmul.f32 %v321, %v339
    %v396 = vmul.f32 %v321, %v340
    %v397 = vmul.f32 %v321, %v341
    %v398 = vmul.f32 %v321, %v342
    %v399 = vmul.f32 %v325, %v339
    %v400 = vmul.f32 %v325, %v340
    %v401 = vmul.f32 %v325, %v341
    %v402 = vmul.f32 %v325, %v342
    %v403 = vmul.f32 %v329, %v339
    %v404 = vmul.f32 %v329, %v340
    %v405 = vmul.f32 %v329, %v341
    %v406 = vmul.f32 %v329, %v342
    %v407 = vadd.f32 %v203, %v343
    %v408 = vadd.f32 %v204, %v344
    %v409 = vadd.f32 %v205, %v345
    %v410 = vadd.f32 %v206, %v346
    %v411 = vadd.f32 %v207, %v347
    %v412 = vadd.f32 %v208, %v348
    %v413 = vadd.f32 %v209, %v349
    %v414 = vadd.f32 %v210, %v350
    %v415 = vadd.f32 %v211, %v351
    %v416 = vadd.f32 %v212, %v352
    %v417 = vadd.f32 %v213, %v353
    %v418 = vadd.f32 %v214, %v354
    %v419 = vadd.f32 %v215, %v355
    %v420 = vadd.f32 %v216, %v356
    %v421 = vadd.f32 %v217, %v357
    %v422 = vadd.f32 %v218, %v358
    %v423 = vadd.f32 %v219, %v359
    %v424 = vadd.f32 %v220, %v360
    %v425 = vadd.f32 %v221, %v361
    %v426 = vadd.f32 %v222, %v362
    %v427 = vadd.f32 %v223, %v363
    %v428 = vadd.f32 %v224, %v364
    %v429 = vadd.f32 %v225, %v365
    %v430 = vadd.f32 %v226, %v366
    %v431 = vadd.f32 %v227, %v367
    %v432 = vadd.f32 %v228, %v368
    %v433 = vadd.f32 %v229, %v369
    %v434 = vadd.f32 %v230, %v370
    %v435 = vadd.f32 %v231, %v371
    %v436 = vadd.f32 %v232, %v372
    %v437 = vadd.f32 %v233, %v373
    %v438 = vadd.f32 %v234, %v374
    %v439 = vadd.f32 %v235, %v375
    %v440 = vadd.f32 %v236, %v376
    %v441 = vadd.f32 %v237, %v377
    %v442 = vadd.f32 %v238, %v378
    %v443 = vadd.f32 %v239, %v379
    %v444 = vadd.f32 %v240, %v380
    %v445 = vadd.f32 %v241, %v381
    %v446 = vadd.f32 %v242, %v382
    %v447 = vadd.f32 %v243, %v383
    %v448 = vadd.f32 %v244, %v384
    %v449 = vadd.f32 %v245, %v385
    %v450 = vadd.f32 %v246, %v386
    %v451 = vadd.f32 %v247, %v387
    %v452 = vadd.f32 %v248, %v388
    %v453 = vadd.f32 %v249, %v389
    %v454 = vadd.f32 %v250, %v390
    %v455 = vadd.f32 %v251, %v391
    %v456 = vadd.f32 %v252, %v392
    %v457 = vadd.f32 %v253, %v393
    %v458 = vadd.f32 %v254, %v394
    %v459 = vadd.f32 %v255, %v395
    %v460 = vadd.f32 %v256, %v396
    %v461 = vadd.f32 %v257, %v397
    %v462 = vadd.f32 %v258, %v398
    %v463 = vadd.f32 %v259, %v399
    %v464 = vadd.f32 %v260, %v400
    %v465 = vadd.f32 %v261, %v401
    %v466 = vadd.f32 %v262, %v402
    %v467 = vadd.f32 %v263, %v403
    %v468 = vadd.f32 %v264, %v404
    %v469 = vadd.f32 %v265, %v405
    %v470 = vadd.f32 %v266, %v406
    %v471 = vld [vmem:[#allocation7] sm:$0xf]
    %v473 = vperm.slane %v471, 0
    %v474 = vperm.slane %v471, 1
    %v475 = vperm.slane %v471, 2
    %v476 = vperm.slane %v471, 3
    %v481 = vadd.f32 %v407, %v473
    %v482 = vadd.f32 %v408, %v474
    %v483 = vadd.f32 %v409, %v475
    %v484 = vadd.f32 %v410, %v476
    %v485 = vadd.f32 %v411, %v473
    %v486 = vadd.f32 %v412, %v474
    %v487 = vadd.f32 %v413, %v475
    %v488 = vadd.f32 %v414, %v476
    %v489 = vadd.f32 %v415, %v473
    %v490 = vadd.f32 %v416, %v474
    %v491 = vadd.f32 %v417, %v475
    %v492 = vadd.f32 %v418, %v476
    %v493 = vadd.f32 %v419, %v473
    %v494 = vadd.f32 %v420, %v474
    %v495 = vadd.f32 %v421, %v475
    %v496 = vadd.f32 %v422, %v476
    %v497 = vadd.f32 %v423, %v473
    %v498 = vadd.f32 %v424, %v474
    %v499 = vadd.f32 %v425, %v475
    %v500 = vadd.f32 %v426, %v476
    %v501 = vadd.f32 %v427, %v473
    %v502 = vadd.f32 %v428, %v474
    %v503 = vadd.f32 %v429, %v475
    %v504 = vadd.f32 %v430, %v476
    %v505 = vadd.f32 %v431, %v473
    %v506 = vadd.f32 %v432, %v474
    %v507 = vadd.f32 %v433, %v475
    %v508 = vadd.f32 %v434, %v476
    %v509 = vadd.f32 %v435, %v473
    %v510 = vadd.f32 %v436, %v474
    %v511 = vadd.f32 %v437, %v475
    %v512 = vadd.f32 %v438, %v476
    %v513 = vadd.f32 %v439, %v473
    %v514 = vadd.f32 %v440, %v474
    %v515 = vadd.f32 %v441, %v475
    %v516 = vadd.f32 %v442, %v476
    %v517 = vadd.f32 %v443, %v473
    %v518 = vadd.f32 %v444, %v474
    %v519 = vadd.f32 %v445, %v475
    %v520 = vadd.f32 %v446, %v476
    %v521 = vadd.f32 %v447, %v473
    %v522 = vadd.f32 %v448, %v474
    %v523 = vadd.f32 %v449, %v475
    %v524 = vadd.f32 %v450, %v476
    %v525 = vadd.f32 %v451, %v473
    %v526 = vadd.f32 %v452, %v474
    %v527 = vadd.f32 %v453, %v475
    %v528 = vadd.f32 %v454, %v476
    %v529 = vadd.f32 %v455, %v473
    %v530 = vadd.f32 %v456, %v474
    %v531 = vadd.f32 %v457, %v475
    %v532 = vadd.f32 %v458, %v476
    %v533 = vadd.f32 %v459, %v473
    %v534 = vadd.f32 %v460, %v474
    %v535 = vadd.f32 %v461, %v475
    %v536 = vadd.f32 %v462, %v476
    %v537 = vadd.f32 %v463, %v473
    %v538 = vadd.f32 %v464, %v474
    %v539 = vadd.f32 %v465, %v475
    %v540 = vadd.f32 %v466, %v476
    %v541 = vadd.f32 %v467, %v473
    %v542 = vadd.f32 %v468, %v474
    %v543 = vadd.f32 %v469, %v475
    %v544 = vadd.f32 %v470, %v476
    %v545 = vld [vmem:[#allocation5] sm:$0xff]
    %v546 = vld [vmem:[#allocation5 + $0x8] sm:$0xff]
    %v547 = vld [vmem:[#allocation5 + $0x10] sm:$0xff]
    %v548 = vld [vmem:[#allocation5 + $0x18] sm:$0xff]
    %v549 = vld [vmem:[#allocation5 + $0x20] sm:$0xff]
    %v550 = vld [vmem:[#allocation5 + $0x28] sm:$0xff]
    %v551 = vld [vmem:[#allocation5 + $0x30] sm:$0xff]
    %v552 = vld [vmem:[#allocation5 + $0x38] sm:$0xff]
    %v553 = vld [vmem:[#allocation5 + $0x40] sm:$0xff]
    %v554 = vld [vmem:[#allocation5 + $0x48] sm:$0xff]
    %v555 = vld [vmem:[#allocation5 + $0x50] sm:$0xff]
    %v556 = vld [vmem:[#allocation5 + $0x58] sm:$0xff]
    %v557 = vld [vmem:[#allocation5 + $0x60] sm:$0xff]
    %v558 = vld [vmem:[#allocation5 + $0x68] sm:$0xff]
    %v559 = vld [vmem:[#allocation5 + $0x70] sm:$0xff]
    %v560 = vld [vmem:[#allocation5 + $0x78] sm:$0xff]
    %v561 = vld [vmem:[#allocation5 + $0x80] sm:$0xff]
    %v562 = vld [vmem:[#allocation5 + $0x88] sm:$0xff]
    %v563 = vld [vmem:[#allocation5 + $0x90] sm:$0xff]
    %v564 = vld [vmem:[#allocation5 + $0x98] sm:$0xff]
    %v565 = vld [vmem:[#allocation5 + $0xa0] sm:$0xff]
    %v566 = vld [vmem:[#allocation5 + $0xa8] sm:$0xff]
    %v567 = vld [vmem:[#allocation5 + $0xb0] sm:$0xff]
    %v568 = vld [vmem:[#allocation5 + $0xb8] sm:$0xff]
    %v569 = vld [vmem:[#allocation5 + $0xc0] sm:$0xff]
    %v570 = vld [vmem:[#allocation5 + $0xc8] sm:$0xff]
    %v571 = vld [vmem:[#allocation5 + $0xd0] sm:$0xff]
    %v572 = vld [vmem:[#allocation5 + $0xd8] sm:$0xff]
    %v573 = vld [vmem:[#allocation5 + $0xe0] sm:$0xff]
    %v574 = vld [vmem:[#allocation5 + $0xe8] sm:$0xff]
    %v575 = vld [vmem:[#allocation5 + $0xf0] sm:$0xff]
    %v576 = vld [vmem:[#allocation5 + $0xf8] sm:$0xff]
    %v577 = vxor.u32 %v481, 2147483648
    %v578 = vxor.u32 %v482, 2147483648
    %v579 = vxor.u32 %v483, 2147483648
    %v580 = vxor.u32 %v485, 2147483648
    %v581 = vxor.u32 %v486, 2147483648
    %v582 = vxor.u32 %v487, 2147483648
    %v583 = vmul.f32 %v577, 1.442695
    %v584 = vpow.pop %v583
    %v585 = vmul.f32 %v578, 1.442695
    %v586 = vpow.pop %v585
    %v587 = vmul.f32 %v579, 1.442695
    %v588 = vpow.pop %v587
    %v589 = vmul.f32 %v580, 1.442695
    %v590 = vpow.pop %v589
    %v591 = vmul.f32 %v581, 1.442695
    %v592 = vpow.pop %v591
    %v593 = vmul.f32 %v582, 1.442695
    %v594 = vpow.pop %v593
    %v595 = vadd.f32 %v584, 1.0
    %v596 = vadd.f32 %v586, 1.0
    %v597 = vadd.f32 %v588, 1.0
    %v598 = vadd.f32 %v590, 1.0
    %v599 = vadd.f32 %v592, 1.0
    %v600 = vadd.f32 %v594, 1.0
    %v601 = vrcp.pop %v595
    %v602 = vmul.f32 %v595, %v601
    %v603 = vsub.f32 1.0, %v602
    %v604 = vmul.f32 %v601, %v603
    %v605 = vadd.f32 %v601, %v604
    %vm606 = vweird.f32 %v595
    %vm607 = vweird.f32 %v601
    %vm608 = vmor %vm606, %vm607
    %v609 = vsel %vm608, %v601, %v605
    %v610 = vand.u32 2147483647, %v595
    %vm611 = vcmp.eq.f32.partialorder %v610, 8.507059e+37
    %v612 = vand.u32 %v595, 2147483648
    %v613 = vor.u32 1.1754944e-38, %v612
    %v614 = vsel %vm611, %v613, %v609
    %v615 = vmul.f32 1.0, %v614
    %v616 = vrcp.pop %v596
    %v617 = vmul.f32 %v596, %v616
    %v618 = vsub.f32 1.0, %v617
    %v619 = vmul.f32 %v616, %v618
    %v620 = vadd.f32 %v616, %v619
    %vm621 = vweird.f32 %v596
    %vm622 = vweird.f32 %v616
    %vm623 = vmor %vm621, %vm622
    %v624 = vsel %vm623, %v616, %v620
    %v625 = vand.u32 2147483647, %v596
    %vm626 = vcmp.eq.f32.partialorder %v625, 8.507059e+37
    %v627 = vand.u32 %v596, 2147483648
    %v628 = vor.u32 1.1754944e-38, %v627
    %v629 = vsel %vm626, %v628, %v624
    %v630 = vmul.f32 1.0, %v629
    %v631 = vrcp.pop %v597
    %v632 = vmul.f32 %v597, %v631
    %v633 = vsub.f32 1.0, %v632
    %v634 = vmul.f32 %v631, %v633
    %v635 = vadd.f32 %v631, %v634
    %vm636 = vweird.f32 %v597
    %vm637 = vweird.f32 %v631
    %vm638 = vmor %vm636, %vm637
    %v639 = vsel %vm638, %v631, %v635
    %v640 = vand.u32 2147483647, %v597
    %vm641 = vcmp.eq.f32.partialorder %v640, 8.507059e+37
    %v642 = vand.u32 %v597, 2147483648
    %v643 = vor.u32 1.1754944e-38, %v642
    %v644 = vsel %vm641, %v643, %v639
    %v645 = vmul.f32 1.0, %v644
    %v646 = vrcp.pop %v598
    %v647 = vmul.f32 %v598, %v646
    %v648 = vsub.f32 1.0, %v647
    %v649 = vmul.f32 %v646, %v648
    %v650 = vadd.f32 %v646, %v649
    %vm651 = vweird.f32 %v598
    %vm652 = vweird.f32 %v646
    %vm653 = vmor %vm651, %vm652
    %v654 = vsel %vm653, %v646, %v650
    %v655 = vand.u32 2147483647, %v598
    %vm656 = vcmp.eq.f32.partialorder %v655, 8.507059e+37
    %v657 = vand.u32 %v598, 2147483648
    %v658 = vor.u32 1.1754944e-38, %v657
    %v659 = vsel %vm656, %v658, %v654
    %v660 = vmul.f32 1.0, %v659
    %v661 = vrcp.pop %v599
    %v662 = vmul.f32 %v599, %v661
    %v663 = vsub.f32 1.0, %v662
    %v664 = vmul.f32 %v661, %v663
    %v665 = vadd.f32 %v661, %v664
    %vm666 = vweird.f32 %v599
    %vm667 = vweird.f32 %v661
    %vm668 = vmor %vm666, %vm667
    %v669 = vsel %vm668, %v661, %v665
    %v670 = vand.u32 2147483647, %v599
    %vm671 = vcmp.eq.f32.partialorder %v670, 8.507059e+37
    %v672 = vand.u32 %v599, 2147483648
    %v673 = vor.u32 1.1754944e-38, %v672
    %v674 = vsel %vm671, %v673, %v669
    %v675 = vmul.f32 1.0, %v674
    %v676 = vrcp.pop %v600
    %v677 = vmul.f32 %v600, %v676
    %v678 = vsub.f32 1.0, %v677
    %v679 = vmul.f32 %v676, %v678
    %v680 = vadd.f32 %v676, %v679
    %vm681 = vweird.f32 %v600
    %vm682 = vweird.f32 %v676
    %vm683 = vmor %vm681, %vm682
    %v684 = vsel %vm683, %v676, %v680
    %v685 = vand.u32 2147483647, %v600
    %vm686 = vcmp.eq.f32.partialorder %v685, 8.507059e+37
    %v687 = vand.u32 %v600, 2147483648
    %v688 = vor.u32 1.1754944e-38, %v687
    %v689 = vsel %vm686, %v688, %v684
    %v690 = vmul.f32 1.0, %v689
    %v691 = vtanh.pop %v484
    %v692 = vtanh.pop %v488
    %v693 = vmul.f32 %v630, 0.0
    %v694 = vmul.f32 %v675, 0.0
    %v695 = vmul.f32 %v615, %v691
    %v696 = vmul.f32 %v660, %v692
    %v697 = vadd.f32 %v693, %v695
    %v698 = vadd.f32 %v694, %v696
    %v699 = vtanh.pop %v697
    %v700 = vtanh.pop %v698
    %v701 = vmul.f32 %v645, %v699
    %v702 = vmul.f32 %v690, %v700
    %v703 = vpack.c.bf16 %v702, %v701
    %v736 = vunpack.c.l.b16 %v545
    %v737 = vunpack.c.h.b16 %v545
    %v738 = vunpack.c.l.b16 %v546
    %v739 = vunpack.c.h.b16 %v546
    %v740 = vunpack.c.l.b16 %v547
    %v741 = vunpack.c.h.b16 %v547
    %v742 = vunpack.c.l.b16 %v548
    %v743 = vunpack.c.h.b16 %v548
    %v744 = vunpack.c.l.b16 %v549
    %v745 = vunpack.c.h.b16 %v549
    %v746 = vunpack.c.l.b16 %v550
    %v747 = vunpack.c.h.b16 %v550
    %v748 = vunpack.c.l.b16 %v551
    %v749 = vunpack.c.h.b16 %v551
    %v750 = vunpack.c.l.b16 %v552
    %v751 = vunpack.c.h.b16 %v552
    %v752 = vunpack.c.l.b16 %v553
    %v753 = vunpack.c.h.b16 %v553
    %v754 = vunpack.c.l.b16 %v554
    %v755 = vunpack.c.h.b16 %v554
    %v756 = vunpack.c.l.b16 %v555
    %v757 = vunpack.c.h.b16 %v555
    %v758 = vunpack.c.l.b16 %v556
    %v759 = vunpack.c.h.b16 %v556
    %v760 = vunpack.c.l.b16 %v557
    %v761 = vunpack.c.h.b16 %v557
    %v762 = vunpack.c.l.b16 %v558
    %v763 = vunpack.c.h.b16 %v558
    %v764 = vunpack.c.l.b16 %v559
    %v765 = vunpack.c.h.b16 %v559
    %v766 = vunpack.c.l.b16 %v560
    %v767 = vunpack.c.h.b16 %v560
    %v768 = vunpack.c.l.b16 %v561
    %v769 = vunpack.c.h.b16 %v561
    %v770 = vunpack.c.l.b16 %v562
    %v771 = vunpack.c.h.b16 %v562
    %v772 = vunpack.c.l.b16 %v563
    %v773 = vunpack.c.h.b16 %v563
    %v774 = vunpack.c.l.b16 %v564
    %v775 = vunpack.c.h.b16 %v564
    %v776 = vunpack.c.l.b16 %v565
    %v777 = vunpack.c.h.b16 %v565
    %v778 = vunpack.c.l.b16 %v566
    %v779 = vunpack.c.h.b16 %v566
    %v780 = vunpack.c.l.b16 %v567
    %v781 = vunpack.c.h.b16 %v567
    %v782 = vunpack.c.l.b16 %v568
    %v783 = vunpack.c.h.b16 %v568
    %v784 = vunpack.c.l.b16 %v569
    %v785 = vunpack.c.h.b16 %v569
    %v786 = vunpack.c.l.b16 %v570
    %v787 = vunpack.c.h.b16 %v570
    %v788 = vunpack.c.l.b16 %v571
    %v789 = vunpack.c.h.b16 %v571
    %v790 = vunpack.c.l.b16 %v572
    %v791 = vunpack.c.h.b16 %v572
    %v792 = vunpack.c.l.b16 %v573
    %v793 = vunpack.c.h.b16 %v573
    %v794 = vunpack.c.l.b16 %v574
    %v795 = vunpack.c.h.b16 %v574
    %v796 = vunpack.c.l.b16 %v575
    %v797 = vunpack.c.h.b16 %v575
    %v798 = vunpack.c.l.b16 %v576
    %v799 = vunpack.c.h.b16 %v576
    %v800 = vpack.c.b16 %v740, %v736
    %v801 = vpack.c.b16 %v741, %v737
    %v802 = vpack.c.b16 %v742, %v738
    %v803 = vpack.c.b16 %v743, %v739
    %v804 = vpack.c.b16 %v748, %v744
    %v805 = vpack.c.b16 %v749, %v745
    %v806 = vpack.c.b16 %v750, %v746
    %v807 = vpack.c.b16 %v751, %v747
    %v808 = vpack.c.b16 %v756, %v752
    %v809 = vpack.c.b16 %v757, %v753
    %v810 = vpack.c.b16 %v758, %v754
    %v811 = vpack.c.b16 %v759, %v755
    %v812 = vpack.c.b16 %v764, %v760
    %v813 = vpack.c.b16 %v765, %v761
    %v814 = vpack.c.b16 %v766, %v762
    %v815 = vpack.c.b16 %v767, %v763
    %v816 = vpack.c.b16 %v772, %v768
    %v817 = vpack.c.b16 %v773, %v769
    %v818 = vpack.c.b16 %v774, %v770
    %v819 = vpack.c.b16 %v775, %v771
    %v820 = vpack.c.b16 %v780, %v776
    %v821 = vpack.c.b16 %v781, %v777
    %v822 = vpack.c.b16 %v782, %v778
    %v823 = vpack.c.b16 %v783, %v779
    %v824 = vpack.c.b16 %v788, %v784
    %v825 = vpack.c.b16 %v789, %v785
    %v826 = vpack.c.b16 %v790, %v786
    %v827 = vpack.c.b16 %v791, %v787
    %v828 = vpack.c.b16 %v796, %v792
    %v829 = vpack.c.b16 %v797, %v793
    %v830 = vpack.c.b16 %v798, %v794
    %v831 = vpack.c.b16 %v799, %v795
    %864 = vmatpush.bf16.msra.mxu0 %v828
    %865 = vmatpush.bf16.msra.mxu0 %v824
    %866 = vmatpush.bf16.msra.mxu0 %v820
    %867 = vmatpush.bf16.msra.mxu0 %v816
    %868 = vmatpush.bf16.msra.mxu0 %v812
    %869 = vmatpush.bf16.msra.mxu0 %v808
    %870 = vmatpush.bf16.msra.mxu0 %v804
    %871 = vmatpush.bf16.msra.mxu0 %v800
    %872 = vmatmul.bf16.gmra.mxu0 %v703
    %v873 = vpop.f32.mrf.mxu0
    %v874 = vadd.f32 0.0, %v873
    %v875 = vpop.f32.mrf.mxu0
    %v876 = vadd.f32 0.0, %v875
    %877 = vdwg.mxu0
    %878 = vmatpush.bf16.msra.mxu0 %v829
    %879 = vmatpush.bf16.msra.mxu0 %v825
    %880 = vmatpush.bf16.msra.mxu0 %v821
    %881 = vmatpush.bf16.msra.mxu0 %v817
    %882 = vmatpush.bf16.msra.mxu0 %v813
    %883 = vmatpush.bf16.msra.mxu0 %v809
    %884 = vmatpush.bf16.msra.mxu0 %v805
    %885 = vmatpush.bf16.msra.mxu0 %v801
    %886 = vmatmul.bf16.gmra.mxu0 %v703
    %v887 = vpop.f32.mrf.mxu0
    %v888 = vadd.f32 0.0, %v887
    %v889 = vpop.f32.mrf.mxu0
    %v890 = vadd.f32 0.0, %v889
    %891 = vdwg.mxu0
    %892 = vmatpush.bf16.msra.mxu0 %v830
    %893 = vmatpush.bf16.msra.mxu0 %v826
    %894 = vmatpush.bf16.msra.mxu0 %v822
    %895 = vmatpush.bf16.msra.mxu0 %v818
    %896 = vmatpush.bf16.msra.mxu0 %v814
    %897 = vmatpush.bf16.msra.mxu0 %v810
    %898 = vmatpush.bf16.msra.mxu0 %v806
    %899 = vmatpush.bf16.msra.mxu0 %v802
    %900 = vmatmul.bf16.gmra.mxu0 %v703
    %v901 = vpop.f32.mrf.mxu0
    %v902 = vadd.f32 0.0, %v901
    %v903 = vpop.f32.mrf.mxu0
    %v904 = vadd.f32 0.0, %v903
    %905 = vdwg.mxu0
    %906 = vmatpush.bf16.msra.mxu0 %v831
    %907 = vmatpush.bf16.msra.mxu0 %v827
    %908 = vmatpush.bf16.msra.mxu0 %v823
    %909 = vmatpush.bf16.msra.mxu0 %v819
    %910 = vmatpush.bf16.msra.mxu0 %v815
    %911 = vmatpush.bf16.msra.mxu0 %v811
    %912 = vmatpush.bf16.msra.mxu0 %v807
    %913 = vmatpush.bf16.msra.mxu0 %v803
    %914 = vmatmul.bf16.gmra.mxu0 %v703
    %v915 = vpop.f32.mrf.mxu0
    %v916 = vadd.f32 0.0, %v915
    %v917 = vpop.f32.mrf.mxu0
    %v918 = vadd.f32 0.0, %v917
    %919 = vdwg.mxu0
    %v920 = vadd.f32 %v489, %v874
    %v921 = vadd.f32 %v490, %v888
    %v922 = vadd.f32 %v491, %v902
    %v923 = vadd.f32 %v492, %v916
    %v924 = vadd.f32 %v493, %v876
    %v925 = vadd.f32 %v494, %v890
    %v926 = vadd.f32 %v495, %v904
    %v927 = vadd.f32 %v496, %v918
    %v928 = vxor.u32 %v920, 2147483648
    %v929 = vxor.u32 %v921, 2147483648
    %v930 = vxor.u32 %v922, 2147483648
    %v931 = vxor.u32 %v924, 2147483648
    %v932 = vxor.u32 %v925, 2147483648
    %v933 = vxor.u32 %v926, 2147483648
    %v934 = vmul.f32 %v928, 1.442695
    %v935 = vpow.pop %v934
    %v936 = vmul.f32 %v929, 1.442695
    %v937 = vpow.pop %v936
    %v938 = vmul.f32 %v930, 1.442695
    %v939 = vpow.pop %v938
    %v940 = vmul.f32 %v931, 1.442695
    %v941 = vpow.pop %v940
    %v942 = vmul.f32 %v932, 1.442695
    %v943 = vpow.pop %v942
    %v944 = vmul.f32 %v933, 1.442695
    %v945 = vpow.pop %v944
    %v946 = vadd.f32 %v935, 1.0
    %v947 = vadd.f32 %v937, 1.0
    %v948 = vadd.f32 %v939, 1.0
    %v949 = vadd.f32 %v941, 1.0
    %v950 = vadd.f32 %v943, 1.0
    %v951 = vadd.f32 %v945, 1.0
    %v952 = vrcp.pop %v946
    %v953 = vmul.f32 %v946, %v952
    %v954 = vsub.f32 1.0, %v953
    %v955 = vmul.f32 %v952, %v954
    %v956 = vadd.f32 %v952, %v955
    %vm957 = vweird.f32 %v946
    %vm958 = vweird.f32 %v952
    %vm959 = vmor %vm957, %vm958
    %v960 = vsel %vm959, %v952, %v956
    %v961 = vand.u32 2147483647, %v946
    %vm962 = vcmp.eq.f32.partialorder %v961, 8.507059e+37
    %v963 = vand.u32 %v946, 2147483648
    %v964 = vor.u32 1.1754944e-38, %v963
    %v965 = vsel %vm962, %v964, %v960
    %v966 = vmul.f32 1.0, %v965
    %v967 = vrcp.pop %v947
    %v968 = vmul.f32 %v947, %v967
    %v969 = vsub.f32 1.0, %v968
    %v970 = vmul.f32 %v967, %v969
    %v971 = vadd.f32 %v967, %v970
    %vm972 = vweird.f32 %v947
    %vm973 = vweird.f32 %v967
    %vm974 = vmor %vm972, %vm973
    %v975 = vsel %vm974, %v967, %v971
    %v976 = vand.u32 2147483647, %v947
    %vm977 = vcmp.eq.f32.partialorder %v976, 8.507059e+37
    %v978 = vand.u32 %v947, 2147483648
    %v979 = vor.u32 1.1754944e-38, %v978
    %v980 = vsel %vm977, %v979, %v975
    %v981 = vmul.f32 1.0, %v980
    %v982 = vrcp.pop %v948
    %v983 = vmul.f32 %v948, %v982
    %v984 = vsub.f32 1.0, %v983
    %v985 = vmul.f32 %v982, %v984
    %v986 = vadd.f32 %v982, %v985
    %vm987 = vweird.f32 %v948
    %vm988 = vweird.f32 %v982
    %vm989 = vmor %vm987, %vm988
    %v990 = vsel %vm989, %v982, %v986
    %v991 = vand.u32 2147483647, %v948
    %vm992 = vcmp.eq.f32.partialorder %v991, 8.507059e+37
    %v993 = vand.u32 %v948, 2147483648
    %v994 = vor.u32 1.1754944e-38, %v993
    %v995 = vsel %vm992, %v994, %v990
    %v996 = vmul.f32 1.0, %v995
    %v997 = vrcp.pop %v949
    %v998 = vmul.f32 %v949, %v997
    %v999 = vsub.f32 1.0, %v998
    %v1000 = vmul.f32 %v997, %v999
    %v1001 = vadd.f32 %v997, %v1000
    %vm1002 = vweird.f32 %v949
    %vm1003 = vweird.f32 %v997
    %vm1004 = vmor %vm1002, %vm1003
    %v1005 = vsel %vm1004, %v997, %v1001
    %v1006 = vand.u32 2147483647, %v949
    %vm1007 = vcmp.eq.f32.partialorder %v1006, 8.507059e+37
    %v1008 = vand.u32 %v949, 2147483648
    %v1009 = vor.u32 1.1754944e-38, %v1008
    %v1010 = vsel %vm1007, %v1009, %v1005
    %v1011 = vmul.f32 1.0, %v1010
    %v1012 = vrcp.pop %v950
    %v1013 = vmul.f32 %v950, %v1012
    %v1014 = vsub.f32 1.0, %v1013
    %v1015 = vmul.f32 %v1012, %v1014
    %v1016 = vadd.f32 %v1012, %v1015
    %vm1017 = vweird.f32 %v950
    %vm1018 = vweird.f32 %v1012
    %vm1019 = vmor %vm1017, %vm1018
    %v1020 = vsel %vm1019, %v1012, %v1016
    %v1021 = vand.u32 2147483647, %v950
    %vm1022 = vcmp.eq.f32.partialorder %v1021, 8.507059e+37
    %v1023 = vand.u32 %v950, 2147483648
    %v1024 = vor.u32 1.1754944e-38, %v1023
    %v1025 = vsel %vm1022, %v1024, %v1020
    %v1026 = vmul.f32 1.0, %v1025
    %v1027 = vrcp.pop %v951
    %v1028 = vmul.f32 %v951, %v1027
    %v1029 = vsub.f32 1.0, %v1028
    %v1030 = vmul.f32 %v1027, %v1029
    %v1031 = vadd.f32 %v1027, %v1030
    %vm1032 = vweird.f32 %v951
    %vm1033 = vweird.f32 %v1027
    %vm1034 = vmor %vm1032, %vm1033
    %v1035 = vsel %vm1034, %v1027, %v1031
    %v1036 = vand.u32 2147483647, %v951
    %vm1037 = vcmp.eq.f32.partialorder %v1036, 8.507059e+37
    %v1038 = vand.u32 %v951, 2147483648
    %v1039 = vor.u32 1.1754944e-38, %v1038
    %v1040 = vsel %vm1037, %v1039, %v1035
    %v1041 = vmul.f32 1.0, %v1040
    %v1042 = vtanh.pop %v923
    %v1043 = vtanh.pop %v927
    %v1044 = vmul.f32 %v981, %v697
    %v1045 = vmul.f32 %v1026, %v698
    %v1046 = vmul.f32 %v966, %v1042
    %v1047 = vmul.f32 %v1011, %v1043
    %v1048 = vadd.f32 %v1044, %v1046
    %v1049 = vadd.f32 %v1045, %v1047
    %v1050 = vtanh.pop %v1048
    %v1051 = vtanh.pop %v1049
    %v1052 = vmul.f32 %v996, %v1050
    %v1053 = vmul.f32 %v1041, %v1051
    %v1054 = vpack.c.bf16 %v1053, %v1052
    %1055 = vmatpush.bf16.msra.mxu0 %v828
    %1056 = vmatpush.bf16.msra.mxu0 %v824
    %1057 = vmatpush.bf16.msra.mxu0 %v820
    %1058 = vmatpush.bf16.msra.mxu0 %v816
    %1059 = vmatpush.bf16.msra.mxu0 %v812
    %1060 = vmatpush.bf16.msra.mxu0 %v808
    %1061 = vmatpush.bf16.msra.mxu0 %v804
    %1062 = vmatpush.bf16.msra.mxu0 %v800
    %1063 = vmatmul.bf16.gmra.mxu0 %v1054
    %v1064 = vpop.f32.mrf.mxu0
    %v1065 = vadd.f32 0.0, %v1064
    %v1066 = vpop.f32.mrf.mxu0
    %v1067 = vadd.f32 0.0, %v1066
    %1068 = vdwg.mxu0
    %1069 = vmatpush.bf16.msra.mxu0 %v829
    %1070 = vmatpush.bf16.msra.mxu0 %v825
    %1071 = vmatpush.bf16.msra.mxu0 %v821
    %1072 = vmatpush.bf16.msra.mxu0 %v817
    %1073 = vmatpush.bf16.msra.mxu0 %v813
    %1074 = vmatpush.bf16.msra.mxu0 %v809
    %1075 = vmatpush.bf16.msra.mxu0 %v805
    %1076 = vmatpush.bf16.msra.mxu0 %v801
    %1077 = vmatmul.bf16.gmra.mxu0 %v1054
    %v1078 = vpop.f32.mrf.mxu0
    %v1079 = vadd.f32 0.0, %v1078
    %v1080 = vpop.f32.mrf.mxu0
    %v1081 = vadd.f32 0.0, %v1080
    %1082 = vdwg.mxu0
    %1083 = vmatpush.bf16.msra.mxu0 %v830
    %1084 = vmatpush.bf16.msra.mxu0 %v826
    %1085 = vmatpush.bf16.msra.mxu0 %v822
    %1086 = vmatpush.bf16.msra.mxu0 %v818
    %1087 = vmatpush.bf16.msra.mxu0 %v814
    %1088 = vmatpush.bf16.msra.mxu0 %v810
    %1089 = vmatpush.bf16.msra.mxu0 %v806
    %1090 = vmatpush.bf16.msra.mxu0 %v802
    %1091 = vmatmul.bf16.gmra.mxu0 %v1054
    %v1092 = vpop.f32.mrf.mxu0
    %v1093 = vadd.f32 0.0, %v1092
    %v1094 = vpop.f32.mrf.mxu0
    %v1095 = vadd.f32 0.0, %v1094
    %1096 = vdwg.mxu0
    %1097 = vmatpush.bf16.msra.mxu0 %v831
    %1098 = vmatpush.bf16.msra.mxu0 %v827
    %1099 = vmatpush.bf16.msra.mxu0 %v823
    %1100 = vmatpush.bf16.msra.mxu0 %v819
    %1101 = vmatpush.bf16.msra.mxu0 %v815
    %1102 = vmatpush.bf16.msra.mxu0 %v811
    %1103 = vmatpush.bf16.msra.mxu0 %v807
    %1104 = vmatpush.bf16.msra.mxu0 %v803
    %1105 = vmatmul.bf16.gmra.mxu0 %v1054
    %v1106 = vpop.f32.mrf.mxu0
    %v1107 = vadd.f32 0.0, %v1106
    %v1108 = vpop.f32.mrf.mxu0
    %v1109 = vadd.f32 0.0, %v1108
    %1110 = vdwg.mxu0
    %v1111 = vadd.f32 %v497, %v1065
    %v1112 = vadd.f32 %v498, %v1079
    %v1113 = vadd.f32 %v499, %v1093
    %v1114 = vadd.f32 %v500, %v1107
    %v1115 = vadd.f32 %v501, %v1067
    %v1116 = vadd.f32 %v502, %v1081
    %v1117 = vadd.f32 %v503, %v1095
    %v1118 = vadd.f32 %v504, %v1109
    %v1119 = vxor.u32 %v1111, 2147483648
    %v1120 = vxor.u32 %v1112, 2147483648
    %v1121 = vxor.u32 %v1113, 2147483648
    %v1122 = vxor.u32 %v1115, 2147483648
    %v1123 = vxor.u32 %v1116, 2147483648
    %v1124 = vxor.u32 %v1117, 2147483648
    %v1125 = vmul.f32 %v1119, 1.442695
    %v1126 = vpow.pop %v1125
    %v1127 = vmul.f32 %v1120, 1.442695
    %v1128 = vpow.pop %v1127
    %v1129 = vmul.f32 %v1121, 1.442695
    %v1130 = vpow.pop %v1129
    %v1131 = vmul.f32 %v1122, 1.442695
    %v1132 = vpow.pop %v1131
    %v1133 = vmul.f32 %v1123, 1.442695
    %v1134 = vpow.pop %v1133
    %v1135 = vmul.f32 %v1124, 1.442695
    %v1136 = vpow.pop %v1135
    %v1137 = vadd.f32 %v1126, 1.0
    %v1138 = vadd.f32 %v1128, 1.0
    %v1139 = vadd.f32 %v1130, 1.0
    %v1140 = vadd.f32 %v1132, 1.0
    %v1141 = vadd.f32 %v1134, 1.0
    %v1142 = vadd.f32 %v1136, 1.0
    %v1143 = vrcp.pop %v1137
    %v1144 = vmul.f32 %v1137, %v1143
    %v1145 = vsub.f32 1.0, %v1144
    %v1146 = vmul.f32 %v1143, %v1145
    %v1147 = vadd.f32 %v1143, %v1146
    %vm1148 = vweird.f32 %v1137
    %vm1149 = vweird.f32 %v1143
    %vm1150 = vmor %vm1148, %vm1149
    %v1151 = vsel %vm1150, %v1143, %v1147
    %v1152 = vand.u32 2147483647, %v1137
    %vm1153 = vcmp.eq.f32.partialorder %v1152, 8.507059e+37
    %v1154 = vand.u32 %v1137, 2147483648
    %v1155 = vor.u32 1.1754944e-38, %v1154
    %v1156 = vsel %vm1153, %v1155, %v1151
    %v1157 = vmul.f32 1.0, %v1156
    %v1158 = vrcp.pop %v1138
    %v1159 = vmul.f32 %v1138, %v1158
    %v1160 = vsub.f32 1.0, %v1159
    %v1161 = vmul.f32 %v1158, %v1160
    %v1162 = vadd.f32 %v1158, %v1161
    %vm1163 = vweird.f32 %v1138
    %vm1164 = vweird.f32 %v1158
    %vm1165 = vmor %vm1163, %vm1164
    %v1166 = vsel %vm1165, %v1158, %v1162
    %v1167 = vand.u32 2147483647, %v1138
    %vm1168 = vcmp.eq.f32.partialorder %v1167, 8.507059e+37
    %v1169 = vand.u32 %v1138, 2147483648
    %v1170 = vor.u32 1.1754944e-38, %v1169
    %v1171 = vsel %vm1168, %v1170, %v1166
    %v1172 = vmul.f32 1.0, %v1171
    %v1173 = vrcp.pop %v1139
    %v1174 = vmul.f32 %v1139, %v1173
    %v1175 = vsub.f32 1.0, %v1174
    %v1176 = vmul.f32 %v1173, %v1175
    %v1177 = vadd.f32 %v1173, %v1176
    %vm1178 = vweird.f32 %v1139
    %vm1179 = vweird.f32 %v1173
    %vm1180 = vmor %vm1178, %vm1179
    %v1181 = vsel %vm1180, %v1173, %v1177
    %v1182 = vand.u32 2147483647, %v1139
    %vm1183 = vcmp.eq.f32.partialorder %v1182, 8.507059e+37
    %v1184 = vand.u32 %v1139, 2147483648
    %v1185 = vor.u32 1.1754944e-38, %v1184
    %v1186 = vsel %vm1183, %v1185, %v1181
    %v1187 = vmul.f32 1.0, %v1186
    %v1188 = vrcp.pop %v1140
    %v1189 = vmul.f32 %v1140, %v1188
    %v1190 = vsub.f32 1.0, %v1189
    %v1191 = vmul.f32 %v1188, %v1190
    %v1192 = vadd.f32 %v1188, %v1191
    %vm1193 = vweird.f32 %v1140
    %vm1194 = vweird.f32 %v1188
    %vm1195 = vmor %vm1193, %vm1194
    %v1196 = vsel %vm1195, %v1188, %v1192
    %v1197 = vand.u32 2147483647, %v1140
    %vm1198 = vcmp.eq.f32.partialorder %v1197, 8.507059e+37
    %v1199 = vand.u32 %v1140, 2147483648
    %v1200 = vor.u32 1.1754944e-38, %v1199
    %v1201 = vsel %vm1198, %v1200, %v1196
    %v1202 = vmul.f32 1.0, %v1201
    %v1203 = vrcp.pop %v1141
    %v1204 = vmul.f32 %v1141, %v1203
    %v1205 = vsub.f32 1.0, %v1204
    %v1206 = vmul.f32 %v1203, %v1205
    %v1207 = vadd.f32 %v1203, %v1206
    %vm1208 = vweird.f32 %v1141
    %vm1209 = vweird.f32 %v1203
    %vm1210 = vmor %vm1208, %vm1209
    %v1211 = vsel %vm1210, %v1203, %v1207
    %v1212 = vand.u32 2147483647, %v1141
    %vm1213 = vcmp.eq.f32.partialorder %v1212, 8.507059e+37
    %v1214 = vand.u32 %v1141, 2147483648
    %v1215 = vor.u32 1.1754944e-38, %v1214
    %v1216 = vsel %vm1213, %v1215, %v1211
    %v1217 = vmul.f32 1.0, %v1216
    %v1218 = vrcp.pop %v1142
    %v1219 = vmul.f32 %v1142, %v1218
    %v1220 = vsub.f32 1.0, %v1219
    %v1221 = vmul.f32 %v1218, %v1220
    %v1222 = vadd.f32 %v1218, %v1221
    %vm1223 = vweird.f32 %v1142
    %vm1224 = vweird.f32 %v1218
    %vm1225 = vmor %vm1223, %vm1224
    %v1226 = vsel %vm1225, %v1218, %v1222
    %v1227 = vand.u32 2147483647, %v1142
    %vm1228 = vcmp.eq.f32.partialorder %v1227, 8.507059e+37
    %v1229 = vand.u32 %v1142, 2147483648
    %v1230 = vor.u32 1.1754944e-38, %v1229
    %v1231 = vsel %vm1228, %v1230, %v1226
    %v1232 = vmul.f32 1.0, %v1231
    %v1233 = vtanh.pop %v1114
    %v1234 = vtanh.pop %v1118
    %v1235 = vmul.f32 %v1172, %v1048
    %v1236 = vmul.f32 %v1217, %v1049
    %v1237 = vmul.f32 %v1157, %v1233
    %v1238 = vmul.f32 %v1202, %v1234
    %v1239 = vadd.f32 %v1235, %v1237
    %v1240 = vadd.f32 %v1236, %v1238
    %v1241 = vtanh.pop %v1239
    %v1242 = vtanh.pop %v1240
    %v1243 = vmul.f32 %v1187, %v1241
    %v1244 = vmul.f32 %v1232, %v1242
    %v1245 = vpack.c.bf16 %v1244, %v1243
    %1246 = vmatpush.bf16.msra.mxu0 %v828
    %1247 = vmatpush.bf16.msra.mxu0 %v824
    %1248 = vmatpush.bf16.msra.mxu0 %v820
    %1249 = vmatpush.bf16.msra.mxu0 %v816
    %1250 = vmatpush.bf16.msra.mxu0 %v812
    %1251 = vmatpush.bf16.msra.mxu0 %v808
    %1252 = vmatpush.bf16.msra.mxu0 %v804
    %1253 = vmatpush.bf16.msra.mxu0 %v800
    %1254 = vmatmul.bf16.gmra.mxu0 %v1245
    %v1255 = vpop.f32.mrf.mxu0
    %v1256 = vadd.f32 0.0, %v1255
    %v1257 = vpop.f32.mrf.mxu0
    %v1258 = vadd.f32 0.0, %v1257
    %1259 = vdwg.mxu0
    %1260 = vmatpush.bf16.msra.mxu0 %v829
    %1261 = vmatpush.bf16.msra.mxu0 %v825
    %1262 = vmatpush.bf16.msra.mxu0 %v821
    %1263 = vmatpush.bf16.msra.mxu0 %v817
    %1264 = vmatpush.bf16.msra.mxu0 %v813
    %1265 = vmatpush.bf16.msra.mxu0 %v809
    %1266 = vmatpush.bf16.msra.mxu0 %v805
    %1267 = vmatpush.bf16.msra.mxu0 %v801
    %1268 = vmatmul.bf16.gmra.mxu0 %v1245
    %v1269 = vpop.f32.mrf.mxu0
    %v1270 = vadd.f32 0.0, %v1269
    %v1271 = vpop.f32.mrf.mxu0
    %v1272 = vadd.f32 0.0, %v1271
    %1273 = vdwg.mxu0
    %1274 = vmatpush.bf16.msra.mxu0 %v830
    %1275 = vmatpush.bf16.msra.mxu0 %v826
    %1276 = vmatpush.bf16.msra.mxu0 %v822
    %1277 = vmatpush.bf16.msra.mxu0 %v818
    %1278 = vmatpush.bf16.msra.mxu0 %v814
    %1279 = vmatpush.bf16.msra.mxu0 %v810
    %1280 = vmatpush.bf16.msra.mxu0 %v806
    %1281 = vmatpush.bf16.msra.mxu0 %v802
    %1282 = vmatmul.bf16.gmra.mxu0 %v1245
    %v1283 = vpop.f32.mrf.mxu0
    %v1284 = vadd.f32 0.0, %v1283
    %v1285 = vpop.f32.mrf.mxu0
    %v1286 = vadd.f32 0.0, %v1285
    %1287 = vdwg.mxu0
    %1288 = vmatpush.bf16.msra.mxu0 %v831
    %1289 = vmatpush.bf16.msra.mxu0 %v827
    %1290 = vmatpush.bf16.msra.mxu0 %v823
    %1291 = vmatpush.bf16.msra.mxu0 %v819
    %1292 = vmatpush.bf16.msra.mxu0 %v815
    %1293 = vmatpush.bf16.msra.mxu0 %v811
    %1294 = vmatpush.bf16.msra.mxu0 %v807
    %1295 = vmatpush.bf16.msra.mxu0 %v803
    %1296 = vmatmul.bf16.gmra.mxu0 %v1245
    %v1297 = vpop.f32.mrf.mxu0
    %v1298 = vadd.f32 0.0, %v1297
    %v1299 = vpop.f32.mrf.mxu0
    %v1300 = vadd.f32 0.0, %v1299
    %1301 = vdwg.mxu0
    %v1302 = vadd.f32 %v505, %v1256
    %v1303 = vadd.f32 %v506, %v1270
    %v1304 = vadd.f32 %v507, %v1284
    %v1305 = vadd.f32 %v508, %v1298
    %v1306 = vadd.f32 %v509, %v1258
    %v1307 = vadd.f32 %v510, %v1272
    %v1308 = vadd.f32 %v511, %v1286
    %v1309 = vadd.f32 %v512, %v1300
    %v1310 = vxor.u32 %v1302, 2147483648
    %v1311 = vxor.u32 %v1303, 2147483648
    %v1312 = vxor.u32 %v1304, 2147483648
    %v1313 = vxor.u32 %v1306, 2147483648
    %v1314 = vxor.u32 %v1307, 2147483648
    %v1315 = vxor.u32 %v1308, 2147483648
    %v1316 = vmul.f32 %v1310, 1.442695
    %v1317 = vpow.pop %v1316
    %v1318 = vmul.f32 %v1311, 1.442695
    %v1319 = vpow.pop %v1318
    %v1320 = vmul.f32 %v1312, 1.442695
    %v1321 = vpow.pop %v1320
    %v1322 = vmul.f32 %v1313, 1.442695
    %v1323 = vpow.pop %v1322
    %v1324 = vmul.f32 %v1314, 1.442695
    %v1325 = vpow.pop %v1324
    %v1326 = vmul.f32 %v1315, 1.442695
    %v1327 = vpow.pop %v1326
    %v1328 = vadd.f32 %v1317, 1.0
    %v1329 = vadd.f32 %v1319, 1.0
    %v1330 = vadd.f32 %v1321, 1.0
    %v1331 = vadd.f32 %v1323, 1.0
    %v1332 = vadd.f32 %v1325, 1.0
    %v1333 = vadd.f32 %v1327, 1.0
    %v1334 = vrcp.pop %v1328
    %v1335 = vmul.f32 %v1328, %v1334
    %v1336 = vsub.f32 1.0, %v1335
    %v1337 = vmul.f32 %v1334, %v1336
    %v1338 = vadd.f32 %v1334, %v1337
    %vm1339 = vweird.f32 %v1328
    %vm1340 = vweird.f32 %v1334
    %vm1341 = vmor %vm1339, %vm1340
    %v1342 = vsel %vm1341, %v1334, %v1338
    %v1343 = vand.u32 2147483647, %v1328
    %vm1344 = vcmp.eq.f32.partialorder %v1343, 8.507059e+37
    %v1345 = vand.u32 %v1328, 2147483648
    %v1346 = vor.u32 1.1754944e-38, %v1345
    %v1347 = vsel %vm1344, %v1346, %v1342
    %v1348 = vmul.f32 1.0, %v1347
    %v1349 = vrcp.pop %v1329
    %v1350 = vmul.f32 %v1329, %v1349
    %v1351 = vsub.f32 1.0, %v1350
    %v1352 = vmul.f32 %v1349, %v1351
    %v1353 = vadd.f32 %v1349, %v1352
    %vm1354 = vweird.f32 %v1329
    %vm1355 = vweird.f32 %v1349
    %vm1356 = vmor %vm1354, %vm1355
    %v1357 = vsel %vm1356, %v1349, %v1353
    %v1358 = vand.u32 2147483647, %v1329
    %vm1359 = vcmp.eq.f32.partialorder %v1358, 8.507059e+37
    %v1360 = vand.u32 %v1329, 2147483648
    %v1361 = vor.u32 1.1754944e-38, %v1360
    %v1362 = vsel %vm1359, %v1361, %v1357
    %v1363 = vmul.f32 1.0, %v1362
    %v1364 = vrcp.pop %v1330
    %v1365 = vmul.f32 %v1330, %v1364
    %v1366 = vsub.f32 1.0, %v1365
    %v1367 = vmul.f32 %v1364, %v1366
    %v1368 = vadd.f32 %v1364, %v1367
    %vm1369 = vweird.f32 %v1330
    %vm1370 = vweird.f32 %v1364
    %vm1371 = vmor %vm1369, %vm1370
    %v1372 = vsel %vm1371, %v1364, %v1368
    %v1373 = vand.u32 2147483647, %v1330
    %vm1374 = vcmp.eq.f32.partialorder %v1373, 8.507059e+37
    %v1375 = vand.u32 %v1330, 2147483648
    %v1376 = vor.u32 1.1754944e-38, %v1375
    %v1377 = vsel %vm1374, %v1376, %v1372
    %v1378 = vmul.f32 1.0, %v1377
    %v1379 = vrcp.pop %v1331
    %v1380 = vmul.f32 %v1331, %v1379
    %v1381 = vsub.f32 1.0, %v1380
    %v1382 = vmul.f32 %v1379, %v1381
    %v1383 = vadd.f32 %v1379, %v1382
    %vm1384 = vweird.f32 %v1331
    %vm1385 = vweird.f32 %v1379
    %vm1386 = vmor %vm1384, %vm1385
    %v1387 = vsel %vm1386, %v1379, %v1383
    %v1388 = vand.u32 2147483647, %v1331
    %vm1389 = vcmp.eq.f32.partialorder %v1388, 8.507059e+37
    %v1390 = vand.u32 %v1331, 2147483648
    %v1391 = vor.u32 1.1754944e-38, %v1390
    %v1392 = vsel %vm1389, %v1391, %v1387
    %v1393 = vmul.f32 1.0, %v1392
    %v1394 = vrcp.pop %v1332
    %v1395 = vmul.f32 %v1332, %v1394
    %v1396 = vsub.f32 1.0, %v1395
    %v1397 = vmul.f32 %v1394, %v1396
    %v1398 = vadd.f32 %v1394, %v1397
    %vm1399 = vweird.f32 %v1332
    %vm1400 = vweird.f32 %v1394
    %vm1401 = vmor %vm1399, %vm1400
    %v1402 = vsel %vm1401, %v1394, %v1398
    %v1403 = vand.u32 2147483647, %v1332
    %vm1404 = vcmp.eq.f32.partialorder %v1403, 8.507059e+37
    %v1405 = vand.u32 %v1332, 2147483648
    %v1406 = vor.u32 1.1754944e-38, %v1405
    %v1407 = vsel %vm1404, %v1406, %v1402
    %v1408 = vmul.f32 1.0, %v1407
    %v1409 = vrcp.pop %v1333
    %v1410 = vmul.f32 %v1333, %v1409
    %v1411 = vsub.f32 1.0, %v1410
    %v1412 = vmul.f32 %v1409, %v1411
    %v1413 = vadd.f32 %v1409, %v1412
    %vm1414 = vweird.f32 %v1333
    %vm1415 = vweird.f32 %v1409
    %vm1416 = vmor %vm1414, %vm1415
    %v1417 = vsel %vm1416, %v1409, %v1413
    %v1418 = vand.u32 2147483647, %v1333
    %vm1419 = vcmp.eq.f32.partialorder %v1418, 8.507059e+37
    %v1420 = vand.u32 %v1333, 2147483648
    %v1421 = vor.u32 1.1754944e-38, %v1420
    %v1422 = vsel %vm1419, %v1421, %v1417
    %v1423 = vmul.f32 1.0, %v1422
    %v1424 = vtanh.pop %v1305
    %v1425 = vtanh.pop %v1309
    %v1426 = vmul.f32 %v1363, %v1239
    %v1427 = vmul.f32 %v1408, %v1240
    %v1428 = vmul.f32 %v1348, %v1424
    %v1429 = vmul.f32 %v1393, %v1425
    %v1430 = vadd.f32 %v1426, %v1428
    %v1431 = vadd.f32 %v1427, %v1429
    %v1432 = vtanh.pop %v1430
    %v1433 = vtanh.pop %v1431
    %v1434 = vmul.f32 %v1378, %v1432
    %v1435 = vmul.f32 %v1423, %v1433
    %v1436 = vpack.c.bf16 %v1435, %v1434
    %1437 = vmatpush.bf16.msra.mxu0 %v828
    %1438 = vmatpush.bf16.msra.mxu0 %v824
    %1439 = vmatpush.bf16.msra.mxu0 %v820
    %1440 = vmatpush.bf16.msra.mxu0 %v816
    %1441 = vmatpush.bf16.msra.mxu0 %v812
    %1442 = vmatpush.bf16.msra.mxu0 %v808
    %1443 = vmatpush.bf16.msra.mxu0 %v804
    %1444 = vmatpush.bf16.msra.mxu0 %v800
    %1445 = vmatmul.bf16.gmra.mxu0 %v1436
    %v1446 = vpop.f32.mrf.mxu0
    %v1447 = vadd.f32 0.0, %v1446
    %v1448 = vpop.f32.mrf.mxu0
    %v1449 = vadd.f32 0.0, %v1448
    %1450 = vdwg.mxu0
    %1451 = vmatpush.bf16.msra.mxu0 %v829
    %1452 = vmatpush.bf16.msra.mxu0 %v825
    %1453 = vmatpush.bf16.msra.mxu0 %v821
    %1454 = vmatpush.bf16.msra.mxu0 %v817
    %1455 = vmatpush.bf16.msra.mxu0 %v813
    %1456 = vmatpush.bf16.msra.mxu0 %v809
    %1457 = vmatpush.bf16.msra.mxu0 %v805
    %1458 = vmatpush.bf16.msra.mxu0 %v801
    %1459 = vmatmul.bf16.gmra.mxu0 %v1436
    %v1460 = vpop.f32.mrf.mxu0
    %v1461 = vadd.f32 0.0, %v1460
    %v1462 = vpop.f32.mrf.mxu0
    %v1463 = vadd.f32 0.0, %v1462
    %1464 = vdwg.mxu0
    %1465 = vmatpush.bf16.msra.mxu0 %v830
    %1466 = vmatpush.bf16.msra.mxu0 %v826
    %1467 = vmatpush.bf16.msra.mxu0 %v822
    %1468 = vmatpush.bf16.msra.mxu0 %v818
    %1469 = vmatpush.bf16.msra.mxu0 %v814
    %1470 = vmatpush.bf16.msra.mxu0 %v810
    %1471 = vmatpush.bf16.msra.mxu0 %v806
    %1472 = vmatpush.bf16.msra.mxu0 %v802
    %1473 = vmatmul.bf16.gmra.mxu0 %v1436
    %v1474 = vpop.f32.mrf.mxu0
    %v1475 = vadd.f32 0.0, %v1474
    %v1476 = vpop.f32.mrf.mxu0
    %v1477 = vadd.f32 0.0, %v1476
    %1478 = vdwg.mxu0
    %1479 = vmatpush.bf16.msra.mxu0 %v831
    %1480 = vmatpush.bf16.msra.mxu0 %v827
    %1481 = vmatpush.bf16.msra.mxu0 %v823
    %1482 = vmatpush.bf16.msra.mxu0 %v819
    %1483 = vmatpush.bf16.msra.mxu0 %v815
    %1484 = vmatpush.bf16.msra.mxu0 %v811
    %1485 = vmatpush.bf16.msra.mxu0 %v807
    %1486 = vmatpush.bf16.msra.mxu0 %v803
    %1487 = vmatmul.bf16.gmra.mxu0 %v1436
    %v1488 = vpop.f32.mrf.mxu0
    %v1489 = vadd.f32 0.0, %v1488
    %v1490 = vpop.f32.mrf.mxu0
    %v1491 = vadd.f32 0.0, %v1490
    %1492 = vdwg.mxu0
    %v1493 = vadd.f32 %v513, %v1447
    %v1494 = vadd.f32 %v514, %v1461
    %v1495 = vadd.f32 %v515, %v1475
    %v1496 = vadd.f32 %v516, %v1489
    %v1497 = vadd.f32 %v517, %v1449
    %v1498 = vadd.f32 %v518, %v1463
    %v1499 = vadd.f32 %v519, %v1477
    %v1500 = vadd.f32 %v520, %v1491
    %v1501 = vxor.u32 %v1493, 2147483648
    %v1502 = vxor.u32 %v1494, 2147483648
    %v1503 = vxor.u32 %v1495, 2147483648
    %v1504 = vxor.u32 %v1497, 2147483648
    %v1505 = vxor.u32 %v1498, 2147483648
    %v1506 = vxor.u32 %v1499, 2147483648
    %v1507 = vmul.f32 %v1501, 1.442695
    %v1508 = vpow.pop %v1507
    %v1509 = vmul.f32 %v1502, 1.442695
    %v1510 = vpow.pop %v1509
    %v1511 = vmul.f32 %v1503, 1.442695
    %v1512 = vpow.pop %v1511
    %v1513 = vmul.f32 %v1504, 1.442695
    %v1514 = vpow.pop %v1513
    %v1515 = vmul.f32 %v1505, 1.442695
    %v1516 = vpow.pop %v1515
    %v1517 = vmul.f32 %v1506, 1.442695
    %v1518 = vpow.pop %v1517
    %v1519 = vadd.f32 %v1508, 1.0
    %v1520 = vadd.f32 %v1510, 1.0
    %v1521 = vadd.f32 %v1512, 1.0
    %v1522 = vadd.f32 %v1514, 1.0
    %v1523 = vadd.f32 %v1516, 1.0
    %v1524 = vadd.f32 %v1518, 1.0
    %v1525 = vrcp.pop %v1519
    %v1526 = vmul.f32 %v1519, %v1525
    %v1527 = vsub.f32 1.0, %v1526
    %v1528 = vmul.f32 %v1525, %v1527
    %v1529 = vadd.f32 %v1525, %v1528
    %vm1530 = vweird.f32 %v1519
    %vm1531 = vweird.f32 %v1525
    %vm1532 = vmor %vm1530, %vm1531
    %v1533 = vsel %vm1532, %v1525, %v1529
    %v1534 = vand.u32 2147483647, %v1519
    %vm1535 = vcmp.eq.f32.partialorder %v1534, 8.507059e+37
    %v1536 = vand.u32 %v1519, 2147483648
    %v1537 = vor.u32 1.1754944e-38, %v1536
    %v1538 = vsel %vm1535, %v1537, %v1533
    %v1539 = vmul.f32 1.0, %v1538
    %v1540 = vrcp.pop %v1520
    %v1541 = vmul.f32 %v1520, %v1540
    %v1542 = vsub.f32 1.0, %v1541
    %v1543 = vmul.f32 %v1540, %v1542
    %v1544 = vadd.f32 %v1540, %v1543
    %vm1545 = vweird.f32 %v1520
    %vm1546 = vweird.f32 %v1540
    %vm1547 = vmor %vm1545, %vm1546
    %v1548 = vsel %vm1547, %v1540, %v1544
    %v1549 = vand.u32 2147483647, %v1520
    %vm1550 = vcmp.eq.f32.partialorder %v1549, 8.507059e+37
    %v1551 = vand.u32 %v1520, 2147483648
    %v1552 = vor.u32 1.1754944e-38, %v1551
    %v1553 = vsel %vm1550, %v1552, %v1548
    %v1554 = vmul.f32 1.0, %v1553
    %v1555 = vrcp.pop %v1521
    %v1556 = vmul.f32 %v1521, %v1555
    %v1557 = vsub.f32 1.0, %v1556
    %v1558 = vmul.f32 %v1555, %v1557
    %v1559 = vadd.f32 %v1555, %v1558
    %vm1560 = vweird.f32 %v1521
    %vm1561 = vweird.f32 %v1555
    %vm1562 = vmor %vm1560, %vm1561
    %v1563 = vsel %vm1562, %v1555, %v1559
    %v1564 = vand.u32 2147483647, %v1521
    %vm1565 = vcmp.eq.f32.partialorder %v1564, 8.507059e+37
    %v1566 = vand.u32 %v1521, 2147483648
    %v1567 = vor.u32 1.1754944e-38, %v1566
    %v1568 = vsel %vm1565, %v1567, %v1563
    %v1569 = vmul.f32 1.0, %v1568
    %v1570 = vrcp.pop %v1522
    %v1571 = vmul.f32 %v1522, %v1570
    %v1572 = vsub.f32 1.0, %v1571
    %v1573 = vmul.f32 %v1570, %v1572
    %v1574 = vadd.f32 %v1570, %v1573
    %vm1575 = vweird.f32 %v1522
    %vm1576 = vweird.f32 %v1570
    %vm1577 = vmor %vm1575, %vm1576
    %v1578 = vsel %vm1577, %v1570, %v1574
    %v1579 = vand.u32 2147483647, %v1522
    %vm1580 = vcmp.eq.f32.partialorder %v1579, 8.507059e+37
    %v1581 = vand.u32 %v1522, 2147483648
    %v1582 = vor.u32 1.1754944e-38, %v1581
    %v1583 = vsel %vm1580, %v1582, %v1578
    %v1584 = vmul.f32 1.0, %v1583
    %v1585 = vrcp.pop %v1523
    %v1586 = vmul.f32 %v1523, %v1585
    %v1587 = vsub.f32 1.0, %v1586
    %v1588 = vmul.f32 %v1585, %v1587
    %v1589 = vadd.f32 %v1585, %v1588
    %vm1590 = vweird.f32 %v1523
    %vm1591 = vweird.f32 %v1585
    %vm1592 = vmor %vm1590, %vm1591
    %v1593 = vsel %vm1592, %v1585, %v1589
    %v1594 = vand.u32 2147483647, %v1523
    %vm1595 = vcmp.eq.f32.partialorder %v1594, 8.507059e+37
    %v1596 = vand.u32 %v1523, 2147483648
    %v1597 = vor.u32 1.1754944e-38, %v1596
    %v1598 = vsel %vm1595, %v1597, %v1593
    %v1599 = vmul.f32 1.0, %v1598
    %v1600 = vrcp.pop %v1524
    %v1601 = vmul.f32 %v1524, %v1600
    %v1602 = vsub.f32 1.0, %v1601
    %v1603 = vmul.f32 %v1600, %v1602
    %v1604 = vadd.f32 %v1600, %v1603
    %vm1605 = vweird.f32 %v1524
    %vm1606 = vweird.f32 %v1600
    %vm1607 = vmor %vm1605, %vm1606
    %v1608 = vsel %vm1607, %v1600, %v1604
    %v1609 = vand.u32 2147483647, %v1524
    %vm1610 = vcmp.eq.f32.partialorder %v1609, 8.507059e+37
    %v1611 = vand.u32 %v1524, 2147483648
    %v1612 = vor.u32 1.1754944e-38, %v1611
    %v1613 = vsel %vm1610, %v1612, %v1608
    %v1614 = vmul.f32 1.0, %v1613
    %v1615 = vtanh.pop %v1496
    %v1616 = vtanh.pop %v1500
    %v1617 = vmul.f32 %v1554, %v1430
    %v1618 = vmul.f32 %v1599, %v1431
    %v1619 = vmul.f32 %v1539, %v1615
    %v1620 = vmul.f32 %v1584, %v1616
    %v1621 = vadd.f32 %v1617, %v1619
    %v1622 = vadd.f32 %v1618, %v1620
    %v1623 = vtanh.pop %v1621
    %v1624 = vtanh.pop %v1622
    %v1625 = vmul.f32 %v1569, %v1623
    %v1626 = vmul.f32 %v1614, %v1624
    %v1627 = vpack.c.bf16 %v1626, %v1625
    %1628 = vmatpush.bf16.msra.mxu0 %v828
    %1629 = vmatpush.bf16.msra.mxu0 %v824
    %1630 = vmatpush.bf16.msra.mxu0 %v820
    %1631 = vmatpush.bf16.msra.mxu0 %v816
    %1632 = vmatpush.bf16.msra.mxu0 %v812
    %1633 = vmatpush.bf16.msra.mxu0 %v808
    %1634 = vmatpush.bf16.msra.mxu0 %v804
    %1635 = vmatpush.bf16.msra.mxu0 %v800
    %1636 = vmatmul.bf16.gmra.mxu0 %v1627
    %v1637 = vpop.f32.mrf.mxu0
    %v1638 = vadd.f32 0.0, %v1637
    %v1639 = vpop.f32.mrf.mxu0
    %v1640 = vadd.f32 0.0, %v1639
    %1641 = vdwg.mxu0
    %1642 = vmatpush.bf16.msra.mxu0 %v829
    %1643 = vmatpush.bf16.msra.mxu0 %v825
    %1644 = vmatpush.bf16.msra.mxu0 %v821
    %1645 = vmatpush.bf16.msra.mxu0 %v817
    %1646 = vmatpush.bf16.msra.mxu0 %v813
    %1647 = vmatpush.bf16.msra.mxu0 %v809
    %1648 = vmatpush.bf16.msra.mxu0 %v805
    %1649 = vmatpush.bf16.msra.mxu0 %v801
    %1650 = vmatmul.bf16.gmra.mxu0 %v1627
    %v1651 = vpop.f32.mrf.mxu0
    %v1652 = vadd.f32 0.0, %v1651
    %v1653 = vpop.f32.mrf.mxu0
    %v1654 = vadd.f32 0.0, %v1653
    %1655 = vdwg.mxu0
    %1656 = vmatpush.bf16.msra.mxu0 %v830
    %1657 = vmatpush.bf16.msra.mxu0 %v826
    %1658 = vmatpush.bf16.msra.mxu0 %v822
    %1659 = vmatpush.bf16.msra.mxu0 %v818
    %1660 = vmatpush.bf16.msra.mxu0 %v814
    %1661 = vmatpush.bf16.msra.mxu0 %v810
    %1662 = vmatpush.bf16.msra.mxu0 %v806
    %1663 = vmatpush.bf16.msra.mxu0 %v802
    %1664 = vmatmul.bf16.gmra.mxu0 %v1627
    %v1665 = vpop.f32.mrf.mxu0
    %v1666 = vadd.f32 0.0, %v1665
    %v1667 = vpop.f32.mrf.mxu0
    %v1668 = vadd.f32 0.0, %v1667
    %1669 = vdwg.mxu0
    %1670 = vmatpush.bf16.msra.mxu0 %v831
    %1671 = vmatpush.bf16.msra.mxu0 %v827
    %1672 = vmatpush.bf16.msra.mxu0 %v823
    %1673 = vmatpush.bf16.msra.mxu0 %v819
    %1674 = vmatpush.bf16.msra.mxu0 %v815
    %1675 = vmatpush.bf16.msra.mxu0 %v811
    %1676 = vmatpush.bf16.msra.mxu0 %v807
    %1677 = vmatpush.bf16.msra.mxu0 %v803
    %1678 = vmatmul.bf16.gmra.mxu0 %v1627
    %v1679 = vpop.f32.mrf.mxu0
    %v1680 = vadd.f32 0.0, %v1679
    %v1681 = vpop.f32.mrf.mxu0
    %v1682 = vadd.f32 0.0, %v1681
    %1683 = vdwg.mxu0
    %v1684 = vadd.f32 %v521, %v1638
    %v1685 = vadd.f32 %v522, %v1652
    %v1686 = vadd.f32 %v523, %v1666
    %v1687 = vadd.f32 %v524, %v1680
    %v1688 = vadd.f32 %v525, %v1640
    %v1689 = vadd.f32 %v526, %v1654
    %v1690 = vadd.f32 %v527, %v1668
    %v1691 = vadd.f32 %v528, %v1682
    %v1692 = vxor.u32 %v1684, 2147483648
    %v1693 = vxor.u32 %v1685, 2147483648
    %v1694 = vxor.u32 %v1686, 2147483648
    %v1695 = vxor.u32 %v1688, 2147483648
    %v1696 = vxor.u32 %v1689, 2147483648
    %v1697 = vxor.u32 %v1690, 2147483648
    %v1698 = vmul.f32 %v1692, 1.442695
    %v1699 = vpow.pop %v1698
    %v1700 = vmul.f32 %v1693, 1.442695
    %v1701 = vpow.pop %v1700
    %v1702 = vmul.f32 %v1694, 1.442695
    %v1703 = vpow.pop %v1702
    %v1704 = vmul.f32 %v1695, 1.442695
    %v1705 = vpow.pop %v1704
    %v1706 = vmul.f32 %v1696, 1.442695
    %v1707 = vpow.pop %v1706
    %v1708 = vmul.f32 %v1697, 1.442695
    %v1709 = vpow.pop %v1708
    %v1710 = vadd.f32 %v1699, 1.0
    %v1711 = vadd.f32 %v1701, 1.0
    %v1712 = vadd.f32 %v1703, 1.0
    %v1713 = vadd.f32 %v1705, 1.0
    %v1714 = vadd.f32 %v1707, 1.0
    %v1715 = vadd.f32 %v1709, 1.0
    %v1716 = vrcp.pop %v1710
    %v1717 = vmul.f32 %v1710, %v1716
    %v1718 = vsub.f32 1.0, %v1717
    %v1719 = vmul.f32 %v1716, %v1718
    %v1720 = vadd.f32 %v1716, %v1719
    %vm1721 = vweird.f32 %v1710
    %vm1722 = vweird.f32 %v1716
    %vm1723 = vmor %vm1721, %vm1722
    %v1724 = vsel %vm1723, %v1716, %v1720
    %v1725 = vand.u32 2147483647, %v1710
    %vm1726 = vcmp.eq.f32.partialorder %v1725, 8.507059e+37
    %v1727 = vand.u32 %v1710, 2147483648
    %v1728 = vor.u32 1.1754944e-38, %v1727
    %v1729 = vsel %vm1726, %v1728, %v1724
    %v1730 = vmul.f32 1.0, %v1729
    %v1731 = vrcp.pop %v1711
    %v1732 = vmul.f32 %v1711, %v1731
    %v1733 = vsub.f32 1.0, %v1732
    %v1734 = vmul.f32 %v1731, %v1733
    %v1735 = vadd.f32 %v1731, %v1734
    %vm1736 = vweird.f32 %v1711
    %vm1737 = vweird.f32 %v1731
    %vm1738 = vmor %vm1736, %vm1737
    %v1739 = vsel %vm1738, %v1731, %v1735
    %v1740 = vand.u32 2147483647, %v1711
    %vm1741 = vcmp.eq.f32.partialorder %v1740, 8.507059e+37
    %v1742 = vand.u32 %v1711, 2147483648
    %v1743 = vor.u32 1.1754944e-38, %v1742
    %v1744 = vsel %vm1741, %v1743, %v1739
    %v1745 = vmul.f32 1.0, %v1744
    %v1746 = vrcp.pop %v1712
    %v1747 = vmul.f32 %v1712, %v1746
    %v1748 = vsub.f32 1.0, %v1747
    %v1749 = vmul.f32 %v1746, %v1748
    %v1750 = vadd.f32 %v1746, %v1749
    %vm1751 = vweird.f32 %v1712
    %vm1752 = vweird.f32 %v1746
    %vm1753 = vmor %vm1751, %vm1752
    %v1754 = vsel %vm1753, %v1746, %v1750
    %v1755 = vand.u32 2147483647, %v1712
    %vm1756 = vcmp.eq.f32.partialorder %v1755, 8.507059e+37
    %v1757 = vand.u32 %v1712, 2147483648
    %v1758 = vor.u32 1.1754944e-38, %v1757
    %v1759 = vsel %vm1756, %v1758, %v1754
    %v1760 = vmul.f32 1.0, %v1759
    %v1761 = vrcp.pop %v1713
    %v1762 = vmul.f32 %v1713, %v1761
    %v1763 = vsub.f32 1.0, %v1762
    %v1764 = vmul.f32 %v1761, %v1763
    %v1765 = vadd.f32 %v1761, %v1764
    %vm1766 = vweird.f32 %v1713
    %vm1767 = vweird.f32 %v1761
    %vm1768 = vmor %vm1766, %vm1767
    %v1769 = vsel %vm1768, %v1761, %v1765
    %v1770 = vand.u32 2147483647, %v1713
    %vm1771 = vcmp.eq.f32.partialorder %v1770, 8.507059e+37
    %v1772 = vand.u32 %v1713, 2147483648
    %v1773 = vor.u32 1.1754944e-38, %v1772
    %v1774 = vsel %vm1771, %v1773, %v1769
    %v1775 = vmul.f32 1.0, %v1774
    %v1776 = vrcp.pop %v1714
    %v1777 = vmul.f32 %v1714, %v1776
    %v1778 = vsub.f32 1.0, %v1777
    %v1779 = vmul.f32 %v1776, %v1778
    %v1780 = vadd.f32 %v1776, %v1779
    %vm1781 = vweird.f32 %v1714
    %vm1782 = vweird.f32 %v1776
    %vm1783 = vmor %vm1781, %vm1782
    %v1784 = vsel %vm1783, %v1776, %v1780
    %v1785 = vand.u32 2147483647, %v1714
    %vm1786 = vcmp.eq.f32.partialorder %v1785, 8.507059e+37
    %v1787 = vand.u32 %v1714, 2147483648
    %v1788 = vor.u32 1.1754944e-38, %v1787
    %v1789 = vsel %vm1786, %v1788, %v1784
    %v1790 = vmul.f32 1.0, %v1789
    %v1791 = vrcp.pop %v1715
    %v1792 = vmul.f32 %v1715, %v1791
    %v1793 = vsub.f32 1.0, %v1792
    %v1794 = vmul.f32 %v1791, %v1793
    %v1795 = vadd.f32 %v1791, %v1794
    %vm1796 = vweird.f32 %v1715
    %vm1797 = vweird.f32 %v1791
    %vm1798 = vmor %vm1796, %vm1797
    %v1799 = vsel %vm1798, %v1791, %v1795
    %v1800 = vand.u32 2147483647, %v1715
    %vm1801 = vcmp.eq.f32.partialorder %v1800, 8.507059e+37
    %v1802 = vand.u32 %v1715, 2147483648
    %v1803 = vor.u32 1.1754944e-38, %v1802
    %v1804 = vsel %vm1801, %v1803, %v1799
    %v1805 = vmul.f32 1.0, %v1804
    %v1806 = vtanh.pop %v1687
    %v1807 = vtanh.pop %v1691
    %v1808 = vmul.f32 %v1745, %v1621
    %v1809 = vmul.f32 %v1790, %v1622
    %v1810 = vmul.f32 %v1730, %v1806
    %v1811 = vmul.f32 %v1775, %v1807
    %v1812 = vadd.f32 %v1808, %v1810
    %v1813 = vadd.f32 %v1809, %v1811
    %v1814 = vtanh.pop %v1812
    %v1815 = vtanh.pop %v1813
    %v1816 = vmul.f32 %v1760, %v1814
    %v1817 = vmul.f32 %v1805, %v1815
    %v1818 = vpack.c.bf16 %v1817, %v1816
    %1819 = vmatpush.bf16.msra.mxu0 %v828
    %1820 = vmatpush.bf16.msra.mxu0 %v824
    %1821 = vmatpush.bf16.msra.mxu0 %v820
    %1822 = vmatpush.bf16.msra.mxu0 %v816
    %1823 = vmatpush.bf16.msra.mxu0 %v812
    %1824 = vmatpush.bf16.msra.mxu0 %v808
    %1825 = vmatpush.bf16.msra.mxu0 %v804
    %1826 = vmatpush.bf16.msra.mxu0 %v800
    %1827 = vmatmul.bf16.gmra.mxu0 %v1818
    %v1828 = vpop.f32.mrf.mxu0
    %v1829 = vadd.f32 0.0, %v1828
    %v1830 = vpop.f32.mrf.mxu0
    %v1831 = vadd.f32 0.0, %v1830
    %1832 = vdwg.mxu0
    %1833 = vmatpush.bf16.msra.mxu0 %v829
    %1834 = vmatpush.bf16.msra.mxu0 %v825
    %1835 = vmatpush.bf16.msra.mxu0 %v821
    %1836 = vmatpush.bf16.msra.mxu0 %v817
    %1837 = vmatpush.bf16.msra.mxu0 %v813
    %1838 = vmatpush.bf16.msra.mxu0 %v809
    %1839 = vmatpush.bf16.msra.mxu0 %v805
    %1840 = vmatpush.bf16.msra.mxu0 %v801
    %1841 = vmatmul.bf16.gmra.mxu0 %v1818
    %v1842 = vpop.f32.mrf.mxu0
    %v1843 = vadd.f32 0.0, %v1842
    %v1844 = vpop.f32.mrf.mxu0
    %v1845 = vadd.f32 0.0, %v1844
    %1846 = vdwg.mxu0
    %1847 = vmatpush.bf16.msra.mxu0 %v830
    %1848 = vmatpush.bf16.msra.mxu0 %v826
    %1849 = vmatpush.bf16.msra.mxu0 %v822
    %1850 = vmatpush.bf16.msra.mxu0 %v818
    %1851 = vmatpush.bf16.msra.mxu0 %v814
    %1852 = vmatpush.bf16.msra.mxu0 %v810
    %1853 = vmatpush.bf16.msra.mxu0 %v806
    %1854 = vmatpush.bf16.msra.mxu0 %v802
    %1855 = vmatmul.bf16.gmra.mxu0 %v1818
    %v1856 = vpop.f32.mrf.mxu0
    %v1857 = vadd.f32 0.0, %v1856
    %v1858 = vpop.f32.mrf.mxu0
    %v1859 = vadd.f32 0.0, %v1858
    %1860 = vdwg.mxu0
    %1861 = vmatpush.bf16.msra.mxu0 %v831
    %1862 = vmatpush.bf16.msra.mxu0 %v827
    %1863 = vmatpush.bf16.msra.mxu0 %v823
    %1864 = vmatpush.bf16.msra.mxu0 %v819
    %1865 = vmatpush.bf16.msra.mxu0 %v815
    %1866 = vmatpush.bf16.msra.mxu0 %v811
    %1867 = vmatpush.bf16.msra.mxu0 %v807
    %1868 = vmatpush.bf16.msra.mxu0 %v803
    %1869 = vmatmul.bf16.gmra.mxu0 %v1818
    %v1870 = vpop.f32.mrf.mxu0
    %v1871 = vadd.f32 0.0, %v1870
    %v1872 = vpop.f32.mrf.mxu0
    %v1873 = vadd.f32 0.0, %v1872
    %1874 = vdwg.mxu0
    %v1875 = vadd.f32 %v529, %v1829
    %v1876 = vadd.f32 %v530, %v1843
    %v1877 = vadd.f32 %v531, %v1857
    %v1878 = vadd.f32 %v532, %v1871
    %v1879 = vadd.f32 %v533, %v1831
    %v1880 = vadd.f32 %v534, %v1845
    %v1881 = vadd.f32 %v535, %v1859
    %v1882 = vadd.f32 %v536, %v1873
    %v1883 = vxor.u32 %v1875, 2147483648
    %v1884 = vxor.u32 %v1876, 2147483648
    %v1885 = vxor.u32 %v1877, 2147483648
    %v1886 = vxor.u32 %v1879, 2147483648
    %v1887 = vxor.u32 %v1880, 2147483648
    %v1888 = vxor.u32 %v1881, 2147483648
    %v1889 = vmul.f32 %v1883, 1.442695
    %v1890 = vpow.pop %v1889
    %v1891 = vmul.f32 %v1884, 1.442695
    %v1892 = vpow.pop %v1891
    %v1893 = vmul.f32 %v1885, 1.442695
    %v1894 = vpow.pop %v1893
    %v1895 = vmul.f32 %v1886, 1.442695
    %v1896 = vpow.pop %v1895
    %v1897 = vmul.f32 %v1887, 1.442695
    %v1898 = vpow.pop %v1897
    %v1899 = vmul.f32 %v1888, 1.442695
    %v1900 = vpow.pop %v1899
    %v1901 = vadd.f32 %v1890, 1.0
    %v1902 = vadd.f32 %v1892, 1.0
    %v1903 = vadd.f32 %v1894, 1.0
    %v1904 = vadd.f32 %v1896, 1.0
    %v1905 = vadd.f32 %v1898, 1.0
    %v1906 = vadd.f32 %v1900, 1.0
    %v1907 = vrcp.pop %v1901
    %v1908 = vmul.f32 %v1901, %v1907
    %v1909 = vsub.f32 1.0, %v1908
    %v1910 = vmul.f32 %v1907, %v1909
    %v1911 = vadd.f32 %v1907, %v1910
    %vm1912 = vweird.f32 %v1901
    %vm1913 = vweird.f32 %v1907
    %vm1914 = vmor %vm1912, %vm1913
    %v1915 = vsel %vm1914, %v1907, %v1911
    %v1916 = vand.u32 2147483647, %v1901
    %vm1917 = vcmp.eq.f32.partialorder %v1916, 8.507059e+37
    %v1918 = vand.u32 %v1901, 2147483648
    %v1919 = vor.u32 1.1754944e-38, %v1918
    %v1920 = vsel %vm1917, %v1919, %v1915
    %v1921 = vmul.f32 1.0, %v1920
    %v1922 = vrcp.pop %v1902
    %v1923 = vmul.f32 %v1902, %v1922
    %v1924 = vsub.f32 1.0, %v1923
    %v1925 = vmul.f32 %v1922, %v1924
    %v1926 = vadd.f32 %v1922, %v1925
    %vm1927 = vweird.f32 %v1902
    %vm1928 = vweird.f32 %v1922
    %vm1929 = vmor %vm1927, %vm1928
    %v1930 = vsel %vm1929, %v1922, %v1926
    %v1931 = vand.u32 2147483647, %v1902
    %vm1932 = vcmp.eq.f32.partialorder %v1931, 8.507059e+37
    %v1933 = vand.u32 %v1902, 2147483648
    %v1934 = vor.u32 1.1754944e-38, %v1933
    %v1935 = vsel %vm1932, %v1934, %v1930
    %v1936 = vmul.f32 1.0, %v1935
    %v1937 = vrcp.pop %v1903
    %v1938 = vmul.f32 %v1903, %v1937
    %v1939 = vsub.f32 1.0, %v1938
    %v1940 = vmul.f32 %v1937, %v1939
    %v1941 = vadd.f32 %v1937, %v1940
    %vm1942 = vweird.f32 %v1903
    %vm1943 = vweird.f32 %v1937
    %vm1944 = vmor %vm1942, %vm1943
    %v1945 = vsel %vm1944, %v1937, %v1941
    %v1946 = vand.u32 2147483647, %v1903
    %vm1947 = vcmp.eq.f32.partialorder %v1946, 8.507059e+37
    %v1948 = vand.u32 %v1903, 2147483648
    %v1949 = vor.u32 1.1754944e-38, %v1948
    %v1950 = vsel %vm1947, %v1949, %v1945
    %v1951 = vmul.f32 1.0, %v1950
    %v1952 = vrcp.pop %v1904
    %v1953 = vmul.f32 %v1904, %v1952
    %v1954 = vsub.f32 1.0, %v1953
    %v1955 = vmul.f32 %v1952, %v1954
    %v1956 = vadd.f32 %v1952, %v1955
    %vm1957 = vweird.f32 %v1904
    %vm1958 = vweird.f32 %v1952
    %vm1959 = vmor %vm1957, %vm1958
    %v1960 = vsel %vm1959, %v1952, %v1956
    %v1961 = vand.u32 2147483647, %v1904
    %vm1962 = vcmp.eq.f32.partialorder %v1961, 8.507059e+37
    %v1963 = vand.u32 %v1904, 2147483648
    %v1964 = vor.u32 1.1754944e-38, %v1963
    %v1965 = vsel %vm1962, %v1964, %v1960
    %v1966 = vmul.f32 1.0, %v1965
    %v1967 = vrcp.pop %v1905
    %v1968 = vmul.f32 %v1905, %v1967
    %v1969 = vsub.f32 1.0, %v1968
    %v1970 = vmul.f32 %v1967, %v1969
    %v1971 = vadd.f32 %v1967, %v1970
    %vm1972 = vweird.f32 %v1905
    %vm1973 = vweird.f32 %v1967
    %vm1974 = vmor %vm1972, %vm1973
    %v1975 = vsel %vm1974, %v1967, %v1971
    %v1976 = vand.u32 2147483647, %v1905
    %vm1977 = vcmp.eq.f32.partialorder %v1976, 8.507059e+37
    %v1978 = vand.u32 %v1905, 2147483648
    %v1979 = vor.u32 1.1754944e-38, %v1978
    %v1980 = vsel %vm1977, %v1979, %v1975
    %v1981 = vmul.f32 1.0, %v1980
    %v1982 = vrcp.pop %v1906
    %v1983 = vmul.f32 %v1906, %v1982
    %v1984 = vsub.f32 1.0, %v1983
    %v1985 = vmul.f32 %v1982, %v1984
    %v1986 = vadd.f32 %v1982, %v1985
    %vm1987 = vweird.f32 %v1906
    %vm1988 = vweird.f32 %v1982
    %vm1989 = vmor %vm1987, %vm1988
    %v1990 = vsel %vm1989, %v1982, %v1986
    %v1991 = vand.u32 2147483647, %v1906
    %vm1992 = vcmp.eq.f32.partialorder %v1991, 8.507059e+37
    %v1993 = vand.u32 %v1906, 2147483648
    %v1994 = vor.u32 1.1754944e-38, %v1993
    %v1995 = vsel %vm1992, %v1994, %v1990
    %v1996 = vmul.f32 1.0, %v1995
    %v1997 = vtanh.pop %v1878
    %v1998 = vtanh.pop %v1882
    %v1999 = vmul.f32 %v1936, %v1812
    %v2000 = vmul.f32 %v1981, %v1813
    %v2001 = vmul.f32 %v1921, %v1997
    %v2002 = vmul.f32 %v1966, %v1998
    %v2003 = vadd.f32 %v1999, %v2001
    %v2004 = vadd.f32 %v2000, %v2002
    %v2005 = vtanh.pop %v2003
    %v2006 = vtanh.pop %v2004
    %v2007 = vmul.f32 %v1951, %v2005
    %v2008 = vmul.f32 %v1996, %v2006
    %v2009 = vpack.c.bf16 %v2008, %v2007
    %2010 = vmatpush.bf16.msra.mxu0 %v828
    %2011 = vmatpush.bf16.msra.mxu0 %v824
    %2012 = vmatpush.bf16.msra.mxu0 %v820
    %2013 = vmatpush.bf16.msra.mxu0 %v816
    %2014 = vmatpush.bf16.msra.mxu0 %v812
    %2015 = vmatpush.bf16.msra.mxu0 %v808
    %2016 = vmatpush.bf16.msra.mxu0 %v804
    %2017 = vmatpush.bf16.msra.mxu0 %v800
    %2018 = vmatmul.bf16.gmra.mxu0 %v2009
    %v2019 = vpop.f32.mrf.mxu0
    %v2020 = vadd.f32 0.0, %v2019
    %v2021 = vpop.f32.mrf.mxu0
    %v2022 = vadd.f32 0.0, %v2021
    %2023 = vdwg.mxu0
    %2024 = vmatpush.bf16.msra.mxu0 %v829
    %2025 = vmatpush.bf16.msra.mxu0 %v825
    %2026 = vmatpush.bf16.msra.mxu0 %v821
    %2027 = vmatpush.bf16.msra.mxu0 %v817
    %2028 = vmatpush.bf16.msra.mxu0 %v813
    %2029 = vmatpush.bf16.msra.mxu0 %v809
    %2030 = vmatpush.bf16.msra.mxu0 %v805
    %2031 = vmatpush.bf16.msra.mxu0 %v801
    %2032 = vmatmul.bf16.gmra.mxu0 %v2009
    %v2033 = vpop.f32.mrf.mxu0
    %v2034 = vadd.f32 0.0, %v2033
    %v2035 = vpop.f32.mrf.mxu0
    %v2036 = vadd.f32 0.0, %v2035
    %2037 = vdwg.mxu0
    %2038 = vmatpush.bf16.msra.mxu0 %v830
    %2039 = vmatpush.bf16.msra.mxu0 %v826
    %2040 = vmatpush.bf16.msra.mxu0 %v822
    %2041 = vmatpush.bf16.msra.mxu0 %v818
    %2042 = vmatpush.bf16.msra.mxu0 %v814
    %2043 = vmatpush.bf16.msra.mxu0 %v810
    %2044 = vmatpush.bf16.msra.mxu0 %v806
    %2045 = vmatpush.bf16.msra.mxu0 %v802
    %2046 = vmatmul.bf16.gmra.mxu0 %v2009
    %v2047 = vpop.f32.mrf.mxu0
    %v2048 = vadd.f32 0.0, %v2047
    %v2049 = vpop.f32.mrf.mxu0
    %v2050 = vadd.f32 0.0, %v2049
    %2051 = vdwg.mxu0
    %2052 = vmatpush.bf16.msra.mxu0 %v831
    %2053 = vmatpush.bf16.msra.mxu0 %v827
    %2054 = vmatpush.bf16.msra.mxu0 %v823
    %2055 = vmatpush.bf16.msra.mxu0 %v819
    %2056 = vmatpush.bf16.msra.mxu0 %v815
    %2057 = vmatpush.bf16.msra.mxu0 %v811
    %2058 = vmatpush.bf16.msra.mxu0 %v807
    %2059 = vmatpush.bf16.msra.mxu0 %v803
    %2060 = vmatmul.bf16.gmra.mxu0 %v2009
    %v2061 = vpop.f32.mrf.mxu0
    %v2062 = vadd.f32 0.0, %v2061
    %v2063 = vpop.f32.mrf.mxu0
    %v2064 = vadd.f32 0.0, %v2063
    %2065 = vdwg.mxu0
    %v2066 = vadd.f32 %v537, %v2020
    %v2067 = vadd.f32 %v538, %v2034
    %v2068 = vadd.f32 %v539, %v2048
    %v2069 = vadd.f32 %v540, %v2062
    %v2070 = vadd.f32 %v541, %v2022
    %v2071 = vadd.f32 %v542, %v2036
    %v2072 = vadd.f32 %v543, %v2050
    %v2073 = vadd.f32 %v544, %v2064
    %v2074 = vxor.u32 %v2066, 2147483648
    %v2075 = vxor.u32 %v2067, 2147483648
    %v2076 = vxor.u32 %v2068, 2147483648
    %v2077 = vxor.u32 %v2070, 2147483648
    %v2078 = vxor.u32 %v2071, 2147483648
    %v2079 = vxor.u32 %v2072, 2147483648
    %v2080 = vmul.f32 %v2074, 1.442695
    %v2081 = vpow.pop %v2080
    %v2082 = vmul.f32 %v2075, 1.442695
    %v2083 = vpow.pop %v2082
    %v2084 = vmul.f32 %v2076, 1.442695
    %v2085 = vpow.pop %v2084
    %v2086 = vmul.f32 %v2077, 1.442695
    %v2087 = vpow.pop %v2086
    %v2088 = vmul.f32 %v2078, 1.442695
    %v2089 = vpow.pop %v2088
    %v2090 = vmul.f32 %v2079, 1.442695
    %v2091 = vpow.pop %v2090
    %v2092 = vadd.f32 %v2081, 1.0
    %v2093 = vadd.f32 %v2083, 1.0
    %v2094 = vadd.f32 %v2085, 1.0
    %v2095 = vadd.f32 %v2087, 1.0
    %v2096 = vadd.f32 %v2089, 1.0
    %v2097 = vadd.f32 %v2091, 1.0
    %v2098 = vrcp.pop %v2092
    %v2099 = vmul.f32 %v2092, %v2098
    %v2100 = vsub.f32 1.0, %v2099
    %v2101 = vmul.f32 %v2098, %v2100
    %v2102 = vadd.f32 %v2098, %v2101
    %vm2103 = vweird.f32 %v2092
    %vm2104 = vweird.f32 %v2098
    %vm2105 = vmor %vm2103, %vm2104
    %v2106 = vsel %vm2105, %v2098, %v2102
    %v2107 = vand.u32 2147483647, %v2092
    %vm2108 = vcmp.eq.f32.partialorder %v2107, 8.507059e+37
    %v2109 = vand.u32 %v2092, 2147483648
    %v2110 = vor.u32 1.1754944e-38, %v2109
    %v2111 = vsel %vm2108, %v2110, %v2106
    %v2112 = vmul.f32 1.0, %v2111
    %v2113 = vrcp.pop %v2093
    %v2114 = vmul.f32 %v2093, %v2113
    %v2115 = vsub.f32 1.0, %v2114
    %v2116 = vmul.f32 %v2113, %v2115
    %v2117 = vadd.f32 %v2113, %v2116
    %vm2118 = vweird.f32 %v2093
    %vm2119 = vweird.f32 %v2113
    %vm2120 = vmor %vm2118, %vm2119
    %v2121 = vsel %vm2120, %v2113, %v2117
    %v2122 = vand.u32 2147483647, %v2093
    %vm2123 = vcmp.eq.f32.partialorder %v2122, 8.507059e+37
    %v2124 = vand.u32 %v2093, 2147483648
    %v2125 = vor.u32 1.1754944e-38, %v2124
    %v2126 = vsel %vm2123, %v2125, %v2121
    %v2127 = vmul.f32 1.0, %v2126
    %v2128 = vrcp.pop %v2094
    %v2129 = vmul.f32 %v2094, %v2128
    %v2130 = vsub.f32 1.0, %v2129
    %v2131 = vmul.f32 %v2128, %v2130
    %v2132 = vadd.f32 %v2128, %v2131
    %vm2133 = vweird.f32 %v2094
    %vm2134 = vweird.f32 %v2128
    %vm2135 = vmor %vm2133, %vm2134
    %v2136 = vsel %vm2135, %v2128, %v2132
    %v2137 = vand.u32 2147483647, %v2094
    %vm2138 = vcmp.eq.f32.partialorder %v2137, 8.507059e+37
    %v2139 = vand.u32 %v2094, 2147483648
    %v2140 = vor.u32 1.1754944e-38, %v2139
    %v2141 = vsel %vm2138, %v2140, %v2136
    %v2142 = vmul.f32 1.0, %v2141
    %v2143 = vrcp.pop %v2095
    %v2144 = vmul.f32 %v2095, %v2143
    %v2145 = vsub.f32 1.0, %v2144
    %v2146 = vmul.f32 %v2143, %v2145
    %v2147 = vadd.f32 %v2143, %v2146
    %vm2148 = vweird.f32 %v2095
    %vm2149 = vweird.f32 %v2143
    %vm2150 = vmor %vm2148, %vm2149
    %v2151 = vsel %vm2150, %v2143, %v2147
    %v2152 = vand.u32 2147483647, %v2095
    %vm2153 = vcmp.eq.f32.partialorder %v2152, 8.507059e+37
    %v2154 = vand.u32 %v2095, 2147483648
    %v2155 = vor.u32 1.1754944e-38, %v2154
    %v2156 = vsel %vm2153, %v2155, %v2151
    %v2157 = vmul.f32 1.0, %v2156
    %v2158 = vrcp.pop %v2096
    %v2159 = vmul.f32 %v2096, %v2158
    %v2160 = vsub.f32 1.0, %v2159
    %v2161 = vmul.f32 %v2158, %v2160
    %v2162 = vadd.f32 %v2158, %v2161
    %vm2163 = vweird.f32 %v2096
    %vm2164 = vweird.f32 %v2158
    %vm2165 = vmor %vm2163, %vm2164
    %v2166 = vsel %vm2165, %v2158, %v2162
    %v2167 = vand.u32 2147483647, %v2096
    %vm2168 = vcmp.eq.f32.partialorder %v2167, 8.507059e+37
    %v2169 = vand.u32 %v2096, 2147483648
    %v2170 = vor.u32 1.1754944e-38, %v2169
    %v2171 = vsel %vm2168, %v2170, %v2166
    %v2172 = vmul.f32 1.0, %v2171
    %v2173 = vrcp.pop %v2097
    %v2174 = vmul.f32 %v2097, %v2173
    %v2175 = vsub.f32 1.0, %v2174
    %v2176 = vmul.f32 %v2173, %v2175
    %v2177 = vadd.f32 %v2173, %v2176
    %vm2178 = vweird.f32 %v2097
    %vm2179 = vweird.f32 %v2173
    %vm2180 = vmor %vm2178, %vm2179
    %v2181 = vsel %vm2180, %v2173, %v2177
    %v2182 = vand.u32 2147483647, %v2097
    %vm2183 = vcmp.eq.f32.partialorder %v2182, 8.507059e+37
    %v2184 = vand.u32 %v2097, 2147483648
    %v2185 = vor.u32 1.1754944e-38, %v2184
    %v2186 = vsel %vm2183, %v2185, %v2181
    %v2187 = vmul.f32 1.0, %v2186
    %v2188 = vtanh.pop %v2069
    %v2189 = vtanh.pop %v2073
    %v2190 = vmul.f32 %v2127, %v2003
    %v2191 = vmul.f32 %v2172, %v2004
    %v2192 = vmul.f32 %v2112, %v2188
    %v2193 = vmul.f32 %v2157, %v2189
    %v2194 = vadd.f32 %v2190, %v2192
    %v2195 = vadd.f32 %v2191, %v2193
    %v2196 = vtanh.pop %v2194
    %v2197 = vtanh.pop %v2195
    %v2198 = vmul.f32 %v2142, %v2196
    %v2199 = vmul.f32 %v2187, %v2197
    %v2200 = vld [vmem:[#allocation8] sm:$0xf]
    %v2201 = vld [vmem:[#allocation8 + $0x4] sm:$0xf]
    %v2202 = vpack.c.bf16 %v2199, %v2198
    %v2203 = vld [vmem:[%s5] sm:$0xf]
    %v2204 = vld [vmem:[%s5 + $0x4] sm:$0xf]
    %v2205 = vld [vmem:[%s5 + $0x8] sm:$0xf]
    %v2206 = vld [vmem:[%s5 + $0xc] sm:$0xf]
    %v2207 = vld [vmem:[%s5 + $0x10] sm:$0xf]
    %v2208 = vld [vmem:[%s5 + $0x14] sm:$0xf]
    %v2209 = vld [vmem:[%s5 + $0x18] sm:$0xf]
    %v2210 = vld [vmem:[%s5 + $0x1c] sm:$0xf]
    %v2211 = vld [vmem:[%s5 + $0x20] sm:$0xf]
    %v2212 = vld [vmem:[%s5 + $0x24] sm:$0xf]
    %v2213 = vld [vmem:[%s5 + $0x28] sm:$0xf]
    %v2214 = vld [vmem:[%s5 + $0x2c] sm:$0xf]
    %v2215 = vld [vmem:[%s5 + $0x30] sm:$0xf]
    %v2216 = vld [vmem:[%s5 + $0x34] sm:$0xf]
    %v2217 = vld [vmem:[%s5 + $0x38] sm:$0xf]
    %v2218 = vld [vmem:[%s5 + $0x3c] sm:$0xf]
    %v2235 = vunpack.c.l.b16 %v2203
    %v2236 = vunpack.c.l.b16 %v2204
    %v2237 = vunpack.c.l.b16 %v2205
    %v2238 = vunpack.c.l.b16 %v2206
    %v2239 = vunpack.c.l.b16 %v2207
    %v2240 = vunpack.c.l.b16 %v2208
    %v2241 = vunpack.c.l.b16 %v2209
    %v2242 = vunpack.c.l.b16 %v2210
    %v2243 = vunpack.c.l.b16 %v2211
    %v2244 = vunpack.c.l.b16 %v2212
    %v2245 = vunpack.c.l.b16 %v2213
    %v2246 = vunpack.c.l.b16 %v2214
    %v2247 = vunpack.c.l.b16 %v2215
    %v2248 = vunpack.c.l.b16 %v2216
    %v2249 = vunpack.c.l.b16 %v2217
    %v2250 = vunpack.c.l.b16 %v2218
    %v2251 = vpack.c.b16 %v2236, %v2235
    %v2252 = vpack.c.b16 %v2238, %v2237
    %v2253 = vpack.c.b16 %v2240, %v2239
    %v2254 = vpack.c.b16 %v2242, %v2241
    %v2255 = vpack.c.b16 %v2244, %v2243
    %v2256 = vpack.c.b16 %v2246, %v2245
    %v2257 = vpack.c.b16 %v2248, %v2247
    %v2258 = vpack.c.b16 %v2250, %v2249
    %2267 = vmatpush.bf16.msra.mxu0 %v2258
    %2268 = vmatpush.bf16.msra.mxu0 %v2257
    %2269 = vmatpush.bf16.msra.mxu0 %v2256
    %2270 = vmatpush.bf16.msra.mxu0 %v2255
    %2271 = vmatpush.bf16.msra.mxu0 %v2254
    %2272 = vmatpush.bf16.msra.mxu0 %v2253
    %2273 = vmatpush.bf16.msra.mxu0 %v2252
    %2274 = vmatpush.bf16.msra.mxu0 %v2251
    %2275 = vmatmul.bf16.gmra.mxu0 %v2202
    %v2276 = vpop.f32.mrf.mxu0
    %v2277 = vadd.f32 0.0, %v2276
    %v2278 = vpop.f32.mrf.mxu0
    %v2279 = vadd.f32 0.0, %v2278
    %2280 = vdwg.mxu0
    %v2281 = vpack.c.bf16 %v2279, %v2277
    %v2282 = vld [vmem:[%s6] sm:$0x1]
    %v2284 = vperm.slane %v2282, 0
    %v2288 = vunpack.c.l.b16 %v2200
    %v2289 = vunpack.c.l.b16 %v2201
    %v2290 = vpack.c.b16 %v2289, %v2288
    %vm2291 = vcmask 130048
    %v2293 = vsel %vm2291, %v2290, 0
    %2295 = vmatpush.bf16.msra.mxu0 0
    %2296 = vmatpush.bf16.msra.mxu0 0
    %2297 = vmatpush.bf16.msra.mxu0 0
    %2298 = vmatpush.bf16.msra.mxu0 0
    %2299 = vmatpush.bf16.msra.mxu0 0
    %2300 = vmatpush.bf16.msra.mxu0 0
    %2301 = vmatpush.bf16.msra.mxu0 0
    %2302 = vmatpush.bf16.msra.mxu0 %v2281
    %2303 = vmatmul.bf16.gmra.mxu0 %v2293
    %v2304 = vpop.f32.mrf.mxu0
    %v2305 = vadd.f32 %v2284, %v2304
    %v2306 = vpop.f32.mrf.mxu0
    %v2307 = vadd.f32 %v2284, %v2306
    %2308 = vdwg.mxu0
    %v2309 = vmax.f32 %v2305, 0.0
    %v2310 = vmax.f32 %v2307, 0.0
    %v2311 = vpack.c.bf16 %v2310, %v2309
    %v2312 = vld [vmem:[%s7] sm:$0xf]
    %v2313 = vld [vmem:[%s7 + $0x4] sm:$0xf]
    %v2314 = vld [vmem:[%s7 + $0x8] sm:$0xf]
    %v2315 = vld [vmem:[%s7 + $0xc] sm:$0xf]
    %v2316 = vld [vmem:[%s7 + $0x10] sm:$0xf]
    %v2317 = vld [vmem:[%s7 + $0x14] sm:$0xf]
    %v2318 = vld [vmem:[%s7 + $0x18] sm:$0xf]
    %v2319 = vld [vmem:[%s7 + $0x1c] sm:$0xf]
    %v2320 = vld [vmem:[%s7 + $0x20] sm:$0xf]
    %v2321 = vld [vmem:[%s7 + $0x24] sm:$0xf]
    %v2322 = vld [vmem:[%s7 + $0x28] sm:$0xf]
    %v2323 = vld [vmem:[%s7 + $0x2c] sm:$0xf]
    %v2324 = vld [vmem:[%s7 + $0x30] sm:$0xf]
    %v2325 = vld [vmem:[%s7 + $0x34] sm:$0xf]
    %v2326 = vld [vmem:[%s7 + $0x38] sm:$0xf]
    %v2327 = vld [vmem:[%s7 + $0x3c] sm:$0xf]
    %v2344 = vunpack.c.l.b16 %v2312
    %v2345 = vunpack.c.l.b16 %v2313
    %v2346 = vunpack.c.l.b16 %v2314
    %v2347 = vunpack.c.l.b16 %v2315
    %v2348 = vunpack.c.l.b16 %v2316
    %v2349 = vunpack.c.l.b16 %v2317
    %v2350 = vunpack.c.l.b16 %v2318
    %v2351 = vunpack.c.l.b16 %v2319
    %v2352 = vunpack.c.l.b16 %v2320
    %v2353 = vunpack.c.l.b16 %v2321
    %v2354 = vunpack.c.l.b16 %v2322
    %v2355 = vunpack.c.l.b16 %v2323
    %v2356 = vunpack.c.l.b16 %v2324
    %v2357 = vunpack.c.l.b16 %v2325
    %v2358 = vunpack.c.l.b16 %v2326
    %v2359 = vunpack.c.l.b16 %v2327
    %v2360 = vpack.c.b16 %v2345, %v2344
    %v2361 = vpack.c.b16 %v2347, %v2346
    %v2362 = vpack.c.b16 %v2349, %v2348
    %v2363 = vpack.c.b16 %v2351, %v2350
    %v2364 = vpack.c.b16 %v2353, %v2352
    %v2365 = vpack.c.b16 %v2355, %v2354
    %v2366 = vpack.c.b16 %v2357, %v2356
    %v2367 = vpack.c.b16 %v2359, %v2358
    %2376 = vmatpush.bf16.msra.mxu0 %v2367
    %2377 = vmatpush.bf16.msra.mxu0 %v2366
    %2378 = vmatpush.bf16.msra.mxu0 %v2365
    %2379 = vmatpush.bf16.msra.mxu0 %v2364
    %2380 = vmatpush.bf16.msra.mxu0 %v2363
    %2381 = vmatpush.bf16.msra.mxu0 %v2362
    %2382 = vmatpush.bf16.msra.mxu0 %v2361
    %2383 = vmatpush.bf16.msra.mxu0 %v2360
    %2384 = vmatmul.bf16.gmra.mxu0 %v2311
    %v2385 = vpop.f32.mrf.mxu0
    %v2386 = vadd.f32 0.0, %v2385
    %v2387 = vpop.f32.mrf.mxu0
    %v2388 = vadd.f32 0.0, %v2387
    %2389 = vdwg.mxu0
    %v2390 = vpack.c.bf16 %v2388, %v2386
    %v2391 = vld [vmem:[%s8] sm:$0x1]
    %v2393 = vperm.slane %v2391, 0
    %2395 = vmatpush.bf16.msra.mxu0 0
    %2396 = vmatpush.bf16.msra.mxu0 0
    %2397 = vmatpush.bf16.msra.mxu0 0
    %2398 = vmatpush.bf16.msra.mxu0 0
    %2399 = vmatpush.bf16.msra.mxu0 0
    %2400 = vmatpush.bf16.msra.mxu0 0
    %2401 = vmatpush.bf16.msra.mxu0 0
    %2402 = vmatpush.bf16.msra.mxu0 %v2390
    %2403 = vmatmul.bf16.gmra.mxu0 %v2293
    %v2404 = vpop.f32.mrf.mxu0
    %v2405 = vadd.f32 %v2393, %v2404
    %v2406 = vpop.f32.mrf.mxu0
    %v2407 = vadd.f32 %v2393, %v2406
    %2408 = vdwg.mxu0
    %v2409 = vsub.f32 %v2405, %v2405
    %v2410 = vsub.f32 %v2407, %v2407
    %v2411 = vmul.f32 %v2409, 1.442695
    %v2412 = vpow.pop %v2411
    %v2413 = vmul.f32 %v2410, 1.442695
    %v2414 = vpow.pop %v2413
    %2415 = vst [vmem:[#allocation10] sm:$0xff] %v2412
    %2416 = vst [vmem:[#allocation10 + $0x8] sm:$0xff] %v2414
    // Predicated region
    $region54: #{tpu_custom_call.1} parent=1 // pred_check
      _
    $region55: #{tpu_custom_call.1} parent=1 // pred_check_branch
      %2418 = sbr.rel (0) target = $region57
    $region56: #{tpu_custom_call.1} parent=1 // pred_region
      %2420 = vsyncadd [#allocation4], 0
      %s2421 = sshll.u32 [#allocation10], 4
      %s2422 = int_to_ptr.vmem [resolvable:$true] %s2421
      %s2423 = sshll.u32 %s9, 4
      %s2424 = int_to_ptr.hbm [resolvable:$true] %s2423
      %2429 = dma.vmem_to_hbm [thread:$0]  %s2422, 256, %s2424, [#allocation4], 128, 128, 8
    $region57: #{tpu_custom_call.1} parent=1 // pred_fallthru
      _
    // Predicated region
    $region58: #{tpu_custom_call.1} parent=1 // pred_check
      _
    $region59: #{tpu_custom_call.1} parent=1 // pred_check_branch
      %2431 = sbr.rel (0) target = $region61
    $region60: #{tpu_custom_call.1} parent=1 // pred_region
      %2433 = dma.done [#allocation4], 256
    $region61: #{tpu_custom_call.1} parent=1 // pred_fallthru
      _
    %2434 = vsyncpa [#allocation3], 1
    %2435 = vsyncpa [#allocation6], 1
    %2436 = vsyncpa [#allocation9], 1
    %2437 = vsyncpa [#allocation4], 1

</llo_original>
